<compile_context>
chip_gen: v7x
topology: tpu7x:2x2x1
jax: 0.10.0
libtpu: 0.0.40
codegen_flags: <defaults>
</compile_context>

<pallas_src>
import jax
import jax.numpy as jnp
from jax.experimental import pallas as pl
from jax.experimental.pallas import tpu as pltpu

# Synthetic config (module default: input_channel = predicate_num * arity_num**2)
PREDICATE_NUM = 8
ARITY_NUM = 4
INPUT_CHANNEL = PREDICATE_NUM * ARITY_NUM ** 2   # 128
HIDDEN1 = 1024
HIDDEN2 = 256
OUTPUT_DIM = 7
OUT_PAD = 128          # lane-dense padded output width (final layer zero-padded)
TILE_B_MAX = 1024      # per-step VMEM at 1024: weights ~1.7 MiB (x2 buf) + tiles + temps ~ 11 MiB


def _round_up(n, m):
    return ((n + m - 1) // m) * m


def _choose_tile_b(batch):
    """Batch tile: multiple of 16 (bf16 sublane pack), >=2 grid steps when possible."""
    if batch <= 16:
        return 16
    # Split the batch across at least two tiles so v7x's two TensorCores both
    # get work under dimension_semantics=("parallel",); cap at TILE_B_MAX.
    half = _round_up(pl.cdiv(batch, 2), 16)
    return min(TILE_B_MAX, half)


def mlp_kernel(x_ref, w1_ref, b1_ref, w2_ref, b2_ref, w3_ref, b3_ref, o_ref):
    # f32 x loaded from HBM, cast to bf16 on the VPU (hidden under MXU time);
    # bf16 operands on the MXU with f32 accumulation; ReLU on the VPU.
    x = x_ref[...].astype(jnp.bfloat16)
    h1 = jnp.dot(x, w1_ref[...], preferred_element_type=jnp.float32) + b1_ref[...]
    h1 = jnp.maximum(h1, 0.0).astype(jnp.bfloat16)
    h2 = jnp.dot(h1, w2_ref[...], preferred_element_type=jnp.float32) + b2_ref[...]
    h2 = jnp.maximum(h2, 0.0).astype(jnp.bfloat16)
    out = jnp.dot(h2, w3_ref[...], preferred_element_type=jnp.float32) + b3_ref[...]
    o_ref[...] = out.astype(o_ref.dtype)


def mlp_forward(x, params):
    """Mirrors MLP.forward: returns (logits, None, None)."""
    w1, b1, w2, b2, w3, b3 = params
    batch = x.shape[0]

    tile_b = _choose_tile_b(batch)
    grid = (pl.cdiv(batch, tile_b),)   # partial last block allowed (no jnp.pad copy)

    flops = 2 * batch * (INPUT_CHANNEL * HIDDEN1 + HIDDEN1 * HIDDEN2 + HIDDEN2 * OUT_PAD)
    bytes_accessed = (
        x.size * 4                                   # f32 activations in
        + (w1.size + w2.size + w3.size) * 2          # bf16 weights
        + (b1.size + b2.size + b3.size) * 4          # f32 biases
        + batch * OUT_PAD * 2                        # bf16 padded output
    )

    out = pl.pallas_call(
        mlp_kernel,
        out_shape=jax.ShapeDtypeStruct((batch, OUT_PAD), jnp.bfloat16),
        grid_spec=pltpu.PrefetchScalarGridSpec(
            num_scalar_prefetch=0,
            grid=grid,
            in_specs=[
                pl.BlockSpec((tile_b, INPUT_CHANNEL), lambda i: (i, 0)),    # x tile (f32)
                pl.BlockSpec((INPUT_CHANNEL, HIDDEN1), lambda i: (0, 0)),   # w1 (resident)
                pl.BlockSpec((1, HIDDEN1), lambda i: (0, 0)),               # b1
                pl.BlockSpec((HIDDEN1, HIDDEN2), lambda i: (0, 0)),         # w2 (resident)
                pl.BlockSpec((1, HIDDEN2), lambda i: (0, 0)),               # b2
                pl.BlockSpec((HIDDEN2, OUT_PAD), lambda i: (0, 0)),         # w3 (lane-padded)
                pl.BlockSpec((1, OUT_PAD), lambda i: (0, 0)),               # b3
            ],
            out_specs=pl.BlockSpec((tile_b, OUT_PAD), lambda i: (i, 0)),
        ),
        compiler_params=pltpu.CompilerParams(
            dimension_semantics=("parallel",),       # v7x: shard batch tiles across both TCs
            vmem_limit_bytes=32 * 1024 * 1024,       # safe vs 64 MiB (v7x) / 128 MiB (v5e/v6e)
        ),
        cost_estimate=pl.CostEstimate(
            flops=flops, transcendentals=0, bytes_accessed=bytes_accessed),
    )(x, w1, b1, w2, b2, w3, b3)

    out = out[:batch, :OUTPUT_DIM].astype(jnp.float32)
    # x.view(batch, -1) is a no-op for a (batch, 7) tensor.
    out = out.reshape(batch, -1)
    return out, None, None


def init_params(key):
    """Deterministic init mimicking nn.Linear default (uniform +-1/sqrt(fan_in)).

    Weights are stored pre-transposed as (in, out) and cast to bf16 ONCE here
    (not per forward call); biases stay f32. The last layer is zero-padded from
    7 to OUT_PAD=128 output columns so the final matmul and output store are
    lane-dense.
    """
    def linear(key, fan_in, fan_out, pad_out=None):
        kw, kb = jax.random.split(key)
        bound = 1.0 / jnp.sqrt(fan_in)
        w = jax.random.uniform(kw, (fan_in, fan_out), jnp.float32, -bound, bound)
        b = jax.random.uniform(kb, (1, fan_out), jnp.float32, -bound, bound)
        if pad_out is not None and pad_out > fan_out:
            w = jnp.pad(w, ((0, 0), (0, pad_out - fan_out)))
            b = jnp.pad(b, ((0, 0), (0, pad_out - fan_out)))
        return w.astype(jnp.bfloat16), b   # bf16 weights cached once; f32 bias

    k1, k2, k3 = jax.random.split(key, 3)
    w1, b1 = linear(k1, INPUT_CHANNEL, HIDDEN1)
    w2, b2 = linear(k2, HIDDEN1, HIDDEN2)
    w3, b3 = linear(k3, HIDDEN2, OUTPUT_DIM, pad_out=OUT_PAD)
    return w1, b1, w2, b2, w3, b3


def _reference(x, params):
    # f32 reference using the same (bf16-rounded) weights, so the comparison
    # isolates the kernel's activation/output rounding.
    w1, b1, w2, b2, w3, b3 = params
    w1, w2, w3 = (w.astype(jnp.float32) for w in (w1, w2, w3))
    r = jnp.maximum(x @ w1 + b1, 0.0)
    r = jnp.maximum(r @ w2 + b2, 0.0)
    return r @ w3[:, :OUTPUT_DIM] + b3[:, :OUTPUT_DIM]


if __name__ == "__main__":
    key = jax.random.PRNGKey(0)
    kp, kx = jax.random.split(key)
    params = init_params(kp)

    # Small, module-consistent shapes: (batch, predicate_num * arity_num**2) = (8, 128)
    batch = 8
    x = jax.random.normal(kx, (batch, INPUT_CHANNEL), jnp.float32)

    out, aux1, aux2 = mlp_forward(x, params)
    out = jax.block_until_ready(out)

    ref = _reference(x, params)
    assert out.shape == (batch, OUTPUT_DIM)
    assert aux1 is None and aux2 is None
    # bf16 activations/output inside the kernel -> loosened tolerance vs f32 ref.
    assert jnp.allclose(out, ref, atol=5e-2, rtol=5e-2)

    # Also exercise the multi-tile path with a batch that is not a tile multiple
    # (300 rows -> tile_b=160, grid=(2,), partial last block, no padding copy).
    x_big = jax.random.normal(jax.random.PRNGKey(1), (300, INPUT_CHANNEL), jnp.float32)
    out_big, _, _ = mlp_forward(x_big, params)
    out_big = jax.block_until_ready(out_big)
    ref_big = _reference(x_big, params)
    assert out_big.shape == (300, OUTPUT_DIM)
    assert jnp.allclose(out_big, ref_big, atol=5e-2, rtol=5e-2)

    print("KERNEL_OK")
</pallas_src>

<mosaic_0001>
module attributes {stable_mosaic.version = 11 : i64} {
  func.func @mlp_kernel(%arg0: i32, %arg1: memref<16x128xf32, #tpu.memory_space<vmem>>, %arg2: memref<128x1024xbf16, #tpu.memory_space<vmem>>, %arg3: memref<1x1024xf32, #tpu.memory_space<vmem>>, %arg4: memref<1024x256xbf16, #tpu.memory_space<vmem>>, %arg5: memref<1x256xf32, #tpu.memory_space<vmem>>, %arg6: memref<256x128xbf16, #tpu.memory_space<vmem>>, %arg7: memref<1x128xf32, #tpu.memory_space<vmem>>, %arg8: memref<16x128xbf16, #tpu.memory_space<vmem>>) attributes {dimension_semantics = [#tpu.dimension_semantics<parallel>], iteration_bounds = array<i64: 1>, scalar_prefetch = 0 : i64, scratch_operands = 0 : i64, tpu.core_type = #tpu.core_type<tc>, window_params = [{transform_indices = @transform_0, window_bounds = array<i64: 16, 128>}, {pipeline_mode = #tpu.pipeline_mode<synchronous>, transform_indices = @transform_1, window_bounds = array<i64: 128, 1024>}, {pipeline_mode = #tpu.pipeline_mode<synchronous>, transform_indices = @transform_2, window_bounds = array<i64: 1, 1024>}, {pipeline_mode = #tpu.pipeline_mode<synchronous>, transform_indices = @transform_3, window_bounds = array<i64: 1024, 256>}, {pipeline_mode = #tpu.pipeline_mode<synchronous>, transform_indices = @transform_4, window_bounds = array<i64: 1, 256>}, {pipeline_mode = #tpu.pipeline_mode<synchronous>, transform_indices = @transform_5, window_bounds = array<i64: 256, 128>}, {pipeline_mode = #tpu.pipeline_mode<synchronous>, transform_indices = @transform_6, window_bounds = array<i64: 1, 128>}, {transform_indices = @transform_7, window_bounds = array<i64: 16, 128>}]} {
    %c0 = arith.constant 0 : index
    %c0_0 = arith.constant 0 : index
    %0 = vector.load %arg1[%c0, %c0_0] : memref<16x128xf32, #tpu.memory_space<vmem>>, vector<16x128xf32>
    %1 = arith.truncf %0 : vector<16x128xf32> to vector<16x128xbf16>
    %c0_1 = arith.constant 0 : index
    %c0_2 = arith.constant 0 : index
    %2 = vector.load %arg2[%c0_1, %c0_2] : memref<128x1024xbf16, #tpu.memory_space<vmem>>, vector<128x1024xbf16>
    %cst = arith.constant dense<0.000000e+00> : vector<16x1024xf32>
    %3 = tpu.matmul %1, %2, %cst {dimension_numbers = #tpu.dot_dimension_numbers<[1], [0], [0], [1], [0, 0, 1, 1], [], []>} : vector<16x128xbf16>, vector<128x1024xbf16>, vector<16x1024xf32> -> vector<16x1024xf32>
    %c0_3 = arith.constant 0 : index
    %c0_4 = arith.constant 0 : index
    %4 = vector.load %arg3[%c0_3, %c0_4] : memref<1x1024xf32, #tpu.memory_space<vmem>>, vector<1x1024xf32>
    %5 = vector.broadcast %4 : vector<1x1024xf32> to vector<16x1024xf32>
    %6 = arith.addf %3, %5 : vector<16x1024xf32>
    %cst_5 = arith.constant 0.000000e+00 : f32
    %7 = vector.broadcast %cst_5 : f32 to vector<16x1024xf32>
    %8 = arith.maximumf %6, %7 : vector<16x1024xf32>
    %9 = arith.truncf %8 : vector<16x1024xf32> to vector<16x1024xbf16>
    %c0_6 = arith.constant 0 : index
    %c0_7 = arith.constant 0 : index
    %10 = vector.load %arg4[%c0_6, %c0_7] : memref<1024x256xbf16, #tpu.memory_space<vmem>>, vector<1024x256xbf16>
    %cst_8 = arith.constant dense<0.000000e+00> : vector<16x256xf32>
    %11 = tpu.matmul %9, %10, %cst_8 {dimension_numbers = #tpu.dot_dimension_numbers<[1], [0], [0], [1], [0, 0, 1, 1], [], []>} : vector<16x1024xbf16>, vector<1024x256xbf16>, vector<16x256xf32> -> vector<16x256xf32>
    %c0_9 = arith.constant 0 : index
    %c0_10 = arith.constant 0 : index
    %12 = vector.load %arg5[%c0_9, %c0_10] : memref<1x256xf32, #tpu.memory_space<vmem>>, vector<1x256xf32>
    %13 = vector.broadcast %12 : vector<1x256xf32> to vector<16x256xf32>
    %14 = arith.addf %11, %13 : vector<16x256xf32>
    %cst_11 = arith.constant 0.000000e+00 : f32
    %15 = vector.broadcast %cst_11 : f32 to vector<16x256xf32>
    %16 = arith.maximumf %14, %15 : vector<16x256xf32>
    %17 = arith.truncf %16 : vector<16x256xf32> to vector<16x256xbf16>
    %c0_12 = arith.constant 0 : index
    %c0_13 = arith.constant 0 : index
    %18 = vector.load %arg6[%c0_12, %c0_13] : memref<256x128xbf16, #tpu.memory_space<vmem>>, vector<256x128xbf16>
    %cst_14 = arith.constant dense<0.000000e+00> : vector<16x128xf32>
    %19 = tpu.matmul %17, %18, %cst_14 {dimension_numbers = #tpu.dot_dimension_numbers<[1], [0], [0], [1], [0, 0, 1, 1], [], []>} : vector<16x256xbf16>, vector<256x128xbf16>, vector<16x128xf32> -> vector<16x128xf32>
    %c0_15 = arith.constant 0 : index
    %c0_16 = arith.constant 0 : index
    %20 = vector.load %arg7[%c0_15, %c0_16] : memref<1x128xf32, #tpu.memory_space<vmem>>, vector<1x128xf32>
    %21 = vector.broadcast %20 : vector<1x128xf32> to vector<16x128xf32>
    %22 = arith.addf %19, %21 : vector<16x128xf32>
    %23 = arith.truncf %22 : vector<16x128xf32> to vector<16x128xbf16>
    %c0_17 = arith.constant 0 : index
    %c0_18 = arith.constant 0 : index
    %24 = vector.load %arg8[%c0_17, %c0_18] : memref<16x128xbf16, #tpu.memory_space<vmem>>, vector<16x128xbf16>
    tpu.vector_store %arg8[%c0_17, %c0_18], %23 {strides = array<i32>} : memref<16x128xbf16, #tpu.memory_space<vmem>>, vector<16x128xbf16>,
    return
  }
  func.func @transform_0(%arg0: i32) -> (i32, i32) {
    %c0_i32 = arith.constant 0 : i32
    %c0_i32_0 = arith.constant 0 : i32
    return %arg0, %c0_i32 : i32, i32
  }
  func.func @transform_1(%arg0: i32) -> (i32, i32) {
    %c0_i32 = arith.constant 0 : i32
    %c0_i32_0 = arith.constant 0 : i32
    %c0_i32_1 = arith.constant 0 : i32
    return %c0_i32, %c0_i32_0 : i32, i32
  }
  func.func @transform_2(%arg0: i32) -> (i32, i32) {
    %c0_i32 = arith.constant 0 : i32
    %c0_i32_0 = arith.constant 0 : i32
    %c0_i32_1 = arith.constant 0 : i32
    return %c0_i32, %c0_i32_0 : i32, i32
  }
  func.func @transform_3(%arg0: i32) -> (i32, i32) {
    %c0_i32 = arith.constant 0 : i32
    %c0_i32_0 = arith.constant 0 : i32
    %c0_i32_1 = arith.constant 0 : i32
    return %c0_i32, %c0_i32_0 : i32, i32
  }
  func.func @transform_4(%arg0: i32) -> (i32, i32) {
    %c0_i32 = arith.constant 0 : i32
    %c0_i32_0 = arith.constant 0 : i32
    %c0_i32_1 = arith.constant 0 : i32
    return %c0_i32, %c0_i32_0 : i32, i32
  }
  func.func @transform_5(%arg0: i32) -> (i32, i32) {
    %c0_i32 = arith.constant 0 : i32
    %c0_i32_0 = arith.constant 0 : i32
    %c0_i32_1 = arith.constant 0 : i32
    return %c0_i32, %c0_i32_0 : i32, i32
  }
  func.func @transform_6(%arg0: i32) -> (i32, i32) {
    %c0_i32 = arith.constant 0 : i32
    %c0_i32_0 = arith.constant 0 : i32
    %c0_i32_1 = arith.constant 0 : i32
    return %c0_i32, %c0_i32_0 : i32, i32
  }
  func.func @transform_7(%arg0: i32) -> (i32, i32) {
    %c0_i32 = arith.constant 0 : i32
    %c0_i32_0 = arith.constant 0 : i32
    return %arg0, %c0_i32 : i32, i32
  }
}

</mosaic_0001>

<llo_original>
// kernel: tpu_custom_call.1
$region0: #{tpu_custom_call.1}
  #allocation0 [shape = 'u32[]', space=smem, size = 0x4, offset = 0x4, fixed_abs, tag = 'smem constant byte address 0x4 - core index']
  #allocation1 [shape = 'u32[144,128]{1,0:T(1,128)}', space=vmem, size = 0x12000, scoped, tag = 'internal scratch']
  %s0 = inlined_call_operand.hbm [shape: f32[8,128], index: 0, kind: input, shape index: {}]
  %s1 = inlined_call_operand.hbm [shape: bf16[128,1024], index: 1, kind: input, shape index: {}]
  %s2 = inlined_call_operand.hbm [shape: f32[1,1024], index: 2, kind: input, shape index: {}]
  %s3 = inlined_call_operand.hbm [shape: bf16[1024,256], index: 3, kind: input, shape index: {}]
  %s4 = inlined_call_operand.vmem [shape: f32[1,256], index: 4, kind: input, shape index: {}]
  %s5 = inlined_call_operand.hbm [shape: bf16[256,128], index: 5, kind: input, shape index: {}]
  %s6 = inlined_call_operand.vmem [shape: f32[1,128], index: 6, kind: input, shape index: {}]
  %s7 = inlined_call_operand.hbm [shape: bf16[8,128], index: 7, kind: output, shape index: {}]
  %s8 = sld [smem:[#allocation0]]
  $region58: #{tpu_custom_call.1} parent=0
    _
  %s10 = ssub.s32 1, %s8
  %s11 = scalar_select 0, %s10, %s8
  $region1: #{tpu_custom_call.1} parent=0
    #allocation2 [shape = 'u8[8192]{0}', space=vmem, size = 0x2000, scoped, tag = 'input window, operand 0, single buffered']
    #allocation3 [shape = 's32[1]{0}', space=sflag, size = 0x4, scoped, tag = 'scoped memory for tpu_custom_call.1']
    #allocation4 [shape = 's32[1]{0}', space=sflag, size = 0x4, scoped, tag = 'scoped memory for tpu_custom_call.1']
    #allocation5 [shape = 'u8[262144]{0}', space=vmem, size = 0x40000, scoped, tag = 'input window, operand 1, single buffered']
    #allocation6 [shape = 's32[1]{0}', space=sflag, size = 0x4, scoped, tag = 'scoped memory for tpu_custom_call.1']
    #allocation7 [shape = 'u8[4096]{0}', space=vmem, size = 0x1000, scoped, tag = 'input window, operand 2, single buffered']
    #allocation8 [shape = 'u8[524288]{0}', space=vmem, size = 0x80000, scoped, tag = 'input window, operand 3, single buffered']
    #allocation9 [shape = 's32[1]{0}', space=sflag, size = 0x4, scoped, tag = 'scoped memory for tpu_custom_call.1']
    #allocation10 [shape = 'u8[65536]{0}', space=vmem, size = 0x10000, scoped, tag = 'input window, operand 5, single buffered']
    #allocation11 [shape = 'u8[4096]{0}', space=vmem, size = 0x1000, scoped, tag = 'output window, operand 0, single buffered']
    %12 = vsyncpa [#allocation3], 0
    %13 = vsyncpa [#allocation6], 0
    %14 = vsyncpa [#allocation9], 0
    %15 = vsyncpa [#allocation4], 0
    // Predicated region
    $region2: #{tpu_custom_call.1} parent=1 // pred_check
      _
    $region3: #{tpu_custom_call.1} parent=1 // pred_check_branch
      %17 = sbr.rel (0) target = $region5
    $region4: #{tpu_custom_call.1} parent=1 // pred_region
      %s19 = ssub.s32 256, 128
      %20 = vsyncadd [#allocation3], %s19
      %s21 = sshll.u32 [#allocation2], 4
      %s22 = int_to_ptr.vmem [resolvable:$true] %s21
      %27 = dma.hbm_to_vmem [thread:$0]  %s0, 128, %s22, [#allocation3], 128, 128, 8
    $region5: #{tpu_custom_call.1} parent=1 // pred_fallthru
      _
    // Predicated region
    $region6: #{tpu_custom_call.1} parent=1 // pred_check
      _
    $region7: #{tpu_custom_call.1} parent=1 // pred_check_branch
      %29 = sbr.rel (0) target = $region9
    $region8: #{tpu_custom_call.1} parent=1 // pred_region
      %s31 = ssub.s32 8192, 8192
      %32 = vsyncadd [#allocation6], %s31
      %s33 = sshll.u32 [#allocation5], 4
      %s34 = int_to_ptr.vmem [resolvable:$true] %s33
      %39 = dma.hbm_to_vmem [thread:$0]  %s1, 8192, %s34, [#allocation6], 512, 512, 32
    $region9: #{tpu_custom_call.1} parent=1 // pred_fallthru
      _
    // Predicated region
    $region10: #{tpu_custom_call.1} parent=1 // pred_check
      _
    $region11: #{tpu_custom_call.1} parent=1 // pred_check_branch
      %41 = sbr.rel (0) target = $region13
    $region12: #{tpu_custom_call.1} parent=1 // pred_region
      %s43 = ssub.s32 128, 128
      %44 = vsyncadd [#allocation6], %s43
      %s46 = sshll.u32 [#allocation7], 4
      %s47 = int_to_ptr.vmem [resolvable:$true] %s46
      %49 = dma.hbm_to_vmem [thread:$0]  %s2, 128, %s47, [#allocation6]
    $region13: #{tpu_custom_call.1} parent=1 // pred_fallthru
      _
    // Predicated region
    $region14: #{tpu_custom_call.1} parent=1 // pred_check
      _
    $region15: #{tpu_custom_call.1} parent=1 // pred_check_branch
      %51 = sbr.rel (0) target = $region17
    $region16: #{tpu_custom_call.1} parent=1 // pred_region
      %s53 = ssub.s32 16384, 16384
      %54 = vsyncadd [#allocation9], %s53
      %s55 = sshll.u32 [#allocation8], 4
      %s56 = int_to_ptr.vmem [resolvable:$true] %s55
      %61 = dma.hbm_to_vmem [thread:$0]  %s3, 16384, %s56, [#allocation9], 128, 128, 8
    $region17: #{tpu_custom_call.1} parent=1 // pred_fallthru
      _
    // Predicated region
    $region18: #{tpu_custom_call.1} parent=1 // pred_check
      _
    $region19: #{tpu_custom_call.1} parent=1 // pred_check_branch
      %63 = sbr.rel (0) target = $region21
    $region20: #{tpu_custom_call.1} parent=1 // pred_region
      _
    $region21: #{tpu_custom_call.1} parent=1 // pred_fallthru
      _
    // Predicated region
    $region22: #{tpu_custom_call.1} parent=1 // pred_check
      _
    $region23: #{tpu_custom_call.1} parent=1 // pred_check_branch
      %65 = sbr.rel (0) target = $region25
    $region24: #{tpu_custom_call.1} parent=1 // pred_region
      %s67 = ssub.s32 2048, 2048
      %68 = vsyncadd [#allocation9], %s67
      %s69 = sshll.u32 [#allocation10], 4
      %s70 = int_to_ptr.vmem [resolvable:$true] %s69
      %75 = dma.hbm_to_vmem [thread:$0]  %s5, 2048, %s70, [#allocation9], 64, 64, 4
    $region25: #{tpu_custom_call.1} parent=1 // pred_fallthru
      _
    // Predicated region
    $region26: #{tpu_custom_call.1} parent=1 // pred_check
      _
    $region27: #{tpu_custom_call.1} parent=1 // pred_check_branch
      %77 = sbr.rel (0) target = $region29
    $region28: #{tpu_custom_call.1} parent=1 // pred_region
      _
    $region29: #{tpu_custom_call.1} parent=1 // pred_fallthru
      _
    // Predicated region
    $region30: #{tpu_custom_call.1} parent=1 // pred_check
      _
    $region31: #{tpu_custom_call.1} parent=1 // pred_check_branch
      %79 = sbr.rel (0) target = $region33
    $region32: #{tpu_custom_call.1} parent=1 // pred_region
      %80 = dma.done [#allocation3], 256
    $region33: #{tpu_custom_call.1} parent=1 // pred_fallthru
      _
    // Predicated region
    $region34: #{tpu_custom_call.1} parent=1 // pred_check
      _
    $region35: #{tpu_custom_call.1} parent=1 // pred_check_branch
      %82 = sbr.rel (0) target = $region37
    $region36: #{tpu_custom_call.1} parent=1 // pred_region
      %83 = dma.done [#allocation6], 8192
    $region37: #{tpu_custom_call.1} parent=1 // pred_fallthru
      _
    // Predicated region
    $region38: #{tpu_custom_call.1} parent=1 // pred_check
      _
    $region39: #{tpu_custom_call.1} parent=1 // pred_check_branch
      %85 = sbr.rel (0) target = $region41
    $region40: #{tpu_custom_call.1} parent=1 // pred_region
      %86 = dma.done [#allocation6], 128
    $region41: #{tpu_custom_call.1} parent=1 // pred_fallthru
      _
    // Predicated region
    $region42: #{tpu_custom_call.1} parent=1 // pred_check
      _
    $region43: #{tpu_custom_call.1} parent=1 // pred_check_branch
      %88 = sbr.rel (0) target = $region45
    $region44: #{tpu_custom_call.1} parent=1 // pred_region
      %89 = dma.done [#allocation9], 16384
    $region45: #{tpu_custom_call.1} parent=1 // pred_fallthru
      _
    // Predicated region
    $region46: #{tpu_custom_call.1} parent=1 // pred_check
      _
    $region47: #{tpu_custom_call.1} parent=1 // pred_check_branch
      %91 = sbr.rel (0) target = $region49
    $region48: #{tpu_custom_call.1} parent=1 // pred_region
      %92 = dma.done [#allocation9], 2048
    $region49: #{tpu_custom_call.1} parent=1 // pred_fallthru
      _
    %v94 = vld [vmem:[#allocation2] sm:$0xff]
    %v95 = vld [vmem:[#allocation2 + $0x8] sm:$0xff]
    %v96 = vpack.c.bf16 %v95, %v94
    %v97 = vld [vmem:[#allocation5] sm:$0xff]
    %v98 = vld [vmem:[#allocation5 + $0x8] sm:$0xff]
    %v99 = vld [vmem:[#allocation5 + $0x10] sm:$0xff]
    %v100 = vld [vmem:[#allocation5 + $0x18] sm:$0xff]
    %v101 = vld [vmem:[#allocation5 + $0x20] sm:$0xff]
    %v102 = vld [vmem:[#allocation5 + $0x28] sm:$0xff]
    %v103 = vld [vmem:[#allocation5 + $0x30] sm:$0xff]
    %v104 = vld [vmem:[#allocation5 + $0x38] sm:$0xff]
    %v105 = vld [vmem:[#allocation5 + $0x40] sm:$0xff]
    %v106 = vld [vmem:[#allocation5 + $0x48] sm:$0xff]
    %v107 = vld [vmem:[#allocation5 + $0x50] sm:$0xff]
    %v108 = vld [vmem:[#allocation5 + $0x58] sm:$0xff]
    %v109 = vld [vmem:[#allocation5 + $0x60] sm:$0xff]
    %v110 = vld [vmem:[#allocation5 + $0x68] sm:$0xff]
    %v111 = vld [vmem:[#allocation5 + $0x70] sm:$0xff]
    %v112 = vld [vmem:[#allocation5 + $0x78] sm:$0xff]
    %v113 = vld [vmem:[#allocation5 + $0x80] sm:$0xff]
    %v114 = vld [vmem:[#allocation5 + $0x88] sm:$0xff]
    %v115 = vld [vmem:[#allocation5 + $0x90] sm:$0xff]
    %v116 = vld [vmem:[#allocation5 + $0x98] sm:$0xff]
    %v117 = vld [vmem:[#allocation5 + $0xa0] sm:$0xff]
    %v118 = vld [vmem:[#allocation5 + $0xa8] sm:$0xff]
    %v119 = vld [vmem:[#allocation5 + $0xb0] sm:$0xff]
    %v120 = vld [vmem:[#allocation5 + $0xb8] sm:$0xff]
    %v121 = vld [vmem:[#allocation5 + $0xc0] sm:$0xff]
    %v122 = vld [vmem:[#allocation5 + $0xc8] sm:$0xff]
    %v123 = vld [vmem:[#allocation5 + $0xd0] sm:$0xff]
    %v124 = vld [vmem:[#allocation5 + $0xd8] sm:$0xff]
    %v125 = vld [vmem:[#allocation5 + $0xe0] sm:$0xff]
    %v126 = vld [vmem:[#allocation5 + $0xe8] sm:$0xff]
    %v127 = vld [vmem:[#allocation5 + $0xf0] sm:$0xff]
    %v128 = vld [vmem:[#allocation5 + $0xf8] sm:$0xff]
    %v129 = vld [vmem:[#allocation5 + $0x100] sm:$0xff]
    %v130 = vld [vmem:[#allocation5 + $0x108] sm:$0xff]
    %v131 = vld [vmem:[#allocation5 + $0x110] sm:$0xff]
    %v132 = vld [vmem:[#allocation5 + $0x118] sm:$0xff]
    %v133 = vld [vmem:[#allocation5 + $0x120] sm:$0xff]
    %v134 = vld [vmem:[#allocation5 + $0x128] sm:$0xff]
    %v135 = vld [vmem:[#allocation5 + $0x130] sm:$0xff]
    %v136 = vld [vmem:[#allocation5 + $0x138] sm:$0xff]
    %v137 = vld [vmem:[#allocation5 + $0x140] sm:$0xff]
    %v138 = vld [vmem:[#allocation5 + $0x148] sm:$0xff]
    %v139 = vld [vmem:[#allocation5 + $0x150] sm:$0xff]
    %v140 = vld [vmem:[#allocation5 + $0x158] sm:$0xff]
    %v141 = vld [vmem:[#allocation5 + $0x160] sm:$0xff]
    %v142 = vld [vmem:[#allocation5 + $0x168] sm:$0xff]
    %v143 = vld [vmem:[#allocation5 + $0x170] sm:$0xff]
    %v144 = vld [vmem:[#allocation5 + $0x178] sm:$0xff]
    %v145 = vld [vmem:[#allocation5 + $0x180] sm:$0xff]
    %v146 = vld [vmem:[#allocation5 + $0x188] sm:$0xff]
    %v147 = vld [vmem:[#allocation5 + $0x190] sm:$0xff]
    %v148 = vld [vmem:[#allocation5 + $0x198] sm:$0xff]
    %v149 = vld [vmem:[#allocation5 + $0x1a0] sm:$0xff]
    %v150 = vld [vmem:[#allocation5 + $0x1a8] sm:$0xff]
    %v151 = vld [vmem:[#allocation5 + $0x1b0] sm:$0xff]
    %v152 = vld [vmem:[#allocation5 + $0x1b8] sm:$0xff]
    %v153 = vld [vmem:[#allocation5 + $0x1c0] sm:$0xff]
    %v154 = vld [vmem:[#allocation5 + $0x1c8] sm:$0xff]
    %v155 = vld [vmem:[#allocation5 + $0x1d0] sm:$0xff]
    %v156 = vld [vmem:[#allocation5 + $0x1d8] sm:$0xff]
    %v157 = vld [vmem:[#allocation5 + $0x1e0] sm:$0xff]
    %v158 = vld [vmem:[#allocation5 + $0x1e8] sm:$0xff]
    %v159 = vld [vmem:[#allocation5 + $0x1f0] sm:$0xff]
    %v160 = vld [vmem:[#allocation5 + $0x1f8] sm:$0xff]
    %v161 = vld [vmem:[#allocation7] sm:$0xff]
    %v163 = vlaneseq
    %v164 = vshrl.u32 %v163, 7
    %v165 = vsub.s32 0, %v164
    %v166 = vrot.slane %v161, %v165
    %v167 = vlaneseq
    %v168 = vshrl.u32 %v167, 7
    %v169 = vsub.s32 1, %v168
    %v170 = vrot.slane %v161, %v169
    %v171 = vlaneseq
    %v172 = vshrl.u32 %v171, 7
    %v173 = vsub.s32 2, %v172
    %v174 = vrot.slane %v161, %v173
    %v175 = vlaneseq
    %v176 = vshrl.u32 %v175, 7
    %v177 = vsub.s32 3, %v176
    %v178 = vrot.slane %v161, %v177
    %v179 = vlaneseq
    %v180 = vshrl.u32 %v179, 7
    %v181 = vsub.s32 4, %v180
    %v182 = vrot.slane %v161, %v181
    %v183 = vlaneseq
    %v184 = vshrl.u32 %v183, 7
    %v185 = vsub.s32 5, %v184
    %v186 = vrot.slane %v161, %v185
    %v187 = vlaneseq
    %v188 = vshrl.u32 %v187, 7
    %v189 = vsub.s32 6, %v188
    %v190 = vrot.slane %v161, %v189
    %v191 = vlaneseq
    %v192 = vshrl.u32 %v191, 7
    %v193 = vsub.s32 7, %v192
    %v194 = vrot.slane %v161, %v193
    %v267 = vunpack.c.l.b16 %v97
    %v268 = vunpack.c.h.b16 %v97
    %v269 = vunpack.c.l.b16 %v98
    %v270 = vunpack.c.h.b16 %v98
    %v271 = vunpack.c.l.b16 %v99
    %v272 = vunpack.c.h.b16 %v99
    %v273 = vunpack.c.l.b16 %v100
    %v274 = vunpack.c.h.b16 %v100
    %v275 = vunpack.c.l.b16 %v101
    %v276 = vunpack.c.h.b16 %v101
    %v277 = vunpack.c.l.b16 %v102
    %v278 = vunpack.c.h.b16 %v102
    %v279 = vunpack.c.l.b16 %v103
    %v280 = vunpack.c.h.b16 %v103
    %v281 = vunpack.c.l.b16 %v104
    %v282 = vunpack.c.h.b16 %v104
    %v283 = vunpack.c.l.b16 %v105
    %v284 = vunpack.c.h.b16 %v105
    %v285 = vunpack.c.l.b16 %v106
    %v286 = vunpack.c.h.b16 %v106
    %v287 = vunpack.c.l.b16 %v107
    %v288 = vunpack.c.h.b16 %v107
    %v289 = vunpack.c.l.b16 %v108
    %v290 = vunpack.c.h.b16 %v108
    %v291 = vunpack.c.l.b16 %v109
    %v292 = vunpack.c.h.b16 %v109
    %v293 = vunpack.c.l.b16 %v110
    %v294 = vunpack.c.h.b16 %v110
    %v295 = vunpack.c.l.b16 %v111
    %v296 = vunpack.c.h.b16 %v111
    %v297 = vunpack.c.l.b16 %v112
    %v298 = vunpack.c.h.b16 %v112
    %v299 = vunpack.c.l.b16 %v113
    %v300 = vunpack.c.h.b16 %v113
    %v301 = vunpack.c.l.b16 %v114
    %v302 = vunpack.c.h.b16 %v114
    %v303 = vunpack.c.l.b16 %v115
    %v304 = vunpack.c.h.b16 %v115
    %v305 = vunpack.c.l.b16 %v116
    %v306 = vunpack.c.h.b16 %v116
    %v307 = vunpack.c.l.b16 %v117
    %v308 = vunpack.c.h.b16 %v117
    %v309 = vunpack.c.l.b16 %v118
    %v310 = vunpack.c.h.b16 %v118
    %v311 = vunpack.c.l.b16 %v119
    %v312 = vunpack.c.h.b16 %v119
    %v313 = vunpack.c.l.b16 %v120
    %v314 = vunpack.c.h.b16 %v120
    %v315 = vunpack.c.l.b16 %v121
    %v316 = vunpack.c.h.b16 %v121
    %v317 = vunpack.c.l.b16 %v122
    %v318 = vunpack.c.h.b16 %v122
    %v319 = vunpack.c.l.b16 %v123
    %v320 = vunpack.c.h.b16 %v123
    %v321 = vunpack.c.l.b16 %v124
    %v322 = vunpack.c.h.b16 %v124
    %v323 = vunpack.c.l.b16 %v125
    %v324 = vunpack.c.h.b16 %v125
    %v325 = vunpack.c.l.b16 %v126
    %v326 = vunpack.c.h.b16 %v126
    %v327 = vunpack.c.l.b16 %v127
    %v328 = vunpack.c.h.b16 %v127
    %v329 = vunpack.c.l.b16 %v128
    %v330 = vunpack.c.h.b16 %v128
    %v331 = vunpack.c.l.b16 %v129
    %v332 = vunpack.c.h.b16 %v129
    %v333 = vunpack.c.l.b16 %v130
    %v334 = vunpack.c.h.b16 %v130
    %v335 = vunpack.c.l.b16 %v131
    %v336 = vunpack.c.h.b16 %v131
    %v337 = vunpack.c.l.b16 %v132
    %v338 = vunpack.c.h.b16 %v132
    %v339 = vunpack.c.l.b16 %v133
    %v340 = vunpack.c.h.b16 %v133
    %v341 = vunpack.c.l.b16 %v134
    %v342 = vunpack.c.h.b16 %v134
    %v343 = vunpack.c.l.b16 %v135
    %v344 = vunpack.c.h.b16 %v135
    %v345 = vunpack.c.l.b16 %v136
    %v346 = vunpack.c.h.b16 %v136
    %v347 = vunpack.c.l.b16 %v137
    %v348 = vunpack.c.h.b16 %v137
    %v349 = vunpack.c.l.b16 %v138
    %v350 = vunpack.c.h.b16 %v138
    %v351 = vunpack.c.l.b16 %v139
    %v352 = vunpack.c.h.b16 %v139
    %v353 = vunpack.c.l.b16 %v140
    %v354 = vunpack.c.h.b16 %v140
    %v355 = vunpack.c.l.b16 %v141
    %v356 = vunpack.c.h.b16 %v141
    %v357 = vunpack.c.l.b16 %v142
    %v358 = vunpack.c.h.b16 %v142
    %v359 = vunpack.c.l.b16 %v143
    %v360 = vunpack.c.h.b16 %v143
    %v361 = vunpack.c.l.b16 %v144
    %v362 = vunpack.c.h.b16 %v144
    %v363 = vunpack.c.l.b16 %v145
    %v364 = vunpack.c.h.b16 %v145
    %v365 = vunpack.c.l.b16 %v146
    %v366 = vunpack.c.h.b16 %v146
    %v367 = vunpack.c.l.b16 %v147
    %v368 = vunpack.c.h.b16 %v147
    %v369 = vunpack.c.l.b16 %v148
    %v370 = vunpack.c.h.b16 %v148
    %v371 = vunpack.c.l.b16 %v149
    %v372 = vunpack.c.h.b16 %v149
    %v373 = vunpack.c.l.b16 %v150
    %v374 = vunpack.c.h.b16 %v150
    %v375 = vunpack.c.l.b16 %v151
    %v376 = vunpack.c.h.b16 %v151
    %v377 = vunpack.c.l.b16 %v152
    %v378 = vunpack.c.h.b16 %v152
    %v379 = vunpack.c.l.b16 %v153
    %v380 = vunpack.c.h.b16 %v153
    %v381 = vunpack.c.l.b16 %v154
    %v382 = vunpack.c.h.b16 %v154
    %v383 = vunpack.c.l.b16 %v155
    %v384 = vunpack.c.h.b16 %v155
    %v385 = vunpack.c.l.b16 %v156
    %v386 = vunpack.c.h.b16 %v156
    %v387 = vunpack.c.l.b16 %v157
    %v388 = vunpack.c.h.b16 %v157
    %v389 = vunpack.c.l.b16 %v158
    %v390 = vunpack.c.h.b16 %v158
    %v391 = vunpack.c.l.b16 %v159
    %v392 = vunpack.c.h.b16 %v159
    %v393 = vunpack.c.l.b16 %v160
    %v394 = vunpack.c.h.b16 %v160
    %v395 = vpack.c.b16 %v275, %v267
    %v396 = vpack.c.b16 %v276, %v268
    %v397 = vpack.c.b16 %v277, %v269
    %v398 = vpack.c.b16 %v278, %v270
    %v399 = vpack.c.b16 %v279, %v271
    %v400 = vpack.c.b16 %v280, %v272
    %v401 = vpack.c.b16 %v281, %v273
    %v402 = vpack.c.b16 %v282, %v274
    %v403 = vpack.c.b16 %v291, %v283
    %v404 = vpack.c.b16 %v292, %v284
    %v405 = vpack.c.b16 %v293, %v285
    %v406 = vpack.c.b16 %v294, %v286
    %v407 = vpack.c.b16 %v295, %v287
    %v408 = vpack.c.b16 %v296, %v288
    %v409 = vpack.c.b16 %v297, %v289
    %v410 = vpack.c.b16 %v298, %v290
    %v411 = vpack.c.b16 %v307, %v299
    %v412 = vpack.c.b16 %v308, %v300
    %v413 = vpack.c.b16 %v309, %v301
    %v414 = vpack.c.b16 %v310, %v302
    %v415 = vpack.c.b16 %v311, %v303
    %v416 = vpack.c.b16 %v312, %v304
    %v417 = vpack.c.b16 %v313, %v305
    %v418 = vpack.c.b16 %v314, %v306
    %v419 = vpack.c.b16 %v323, %v315
    %v420 = vpack.c.b16 %v324, %v316
    %v421 = vpack.c.b16 %v325, %v317
    %v422 = vpack.c.b16 %v326, %v318
    %v423 = vpack.c.b16 %v327, %v319
    %v424 = vpack.c.b16 %v328, %v320
    %v425 = vpack.c.b16 %v329, %v321
    %v426 = vpack.c.b16 %v330, %v322
    %v427 = vpack.c.b16 %v339, %v331
    %v428 = vpack.c.b16 %v340, %v332
    %v429 = vpack.c.b16 %v341, %v333
    %v430 = vpack.c.b16 %v342, %v334
    %v431 = vpack.c.b16 %v343, %v335
    %v432 = vpack.c.b16 %v344, %v336
    %v433 = vpack.c.b16 %v345, %v337
    %v434 = vpack.c.b16 %v346, %v338
    %v435 = vpack.c.b16 %v355, %v347
    %v436 = vpack.c.b16 %v356, %v348
    %v437 = vpack.c.b16 %v357, %v349
    %v438 = vpack.c.b16 %v358, %v350
    %v439 = vpack.c.b16 %v359, %v351
    %v440 = vpack.c.b16 %v360, %v352
    %v441 = vpack.c.b16 %v361, %v353
    %v442 = vpack.c.b16 %v362, %v354
    %v443 = vpack.c.b16 %v371, %v363
    %v444 = vpack.c.b16 %v372, %v364
    %v445 = vpack.c.b16 %v373, %v365
    %v446 = vpack.c.b16 %v374, %v366
    %v447 = vpack.c.b16 %v375, %v367
    %v448 = vpack.c.b16 %v376, %v368
    %v449 = vpack.c.b16 %v377, %v369
    %v450 = vpack.c.b16 %v378, %v370
    %v451 = vpack.c.b16 %v387, %v379
    %v452 = vpack.c.b16 %v388, %v380
    %v453 = vpack.c.b16 %v389, %v381
    %v454 = vpack.c.b16 %v390, %v382
    %v455 = vpack.c.b16 %v391, %v383
    %v456 = vpack.c.b16 %v392, %v384
    %v457 = vpack.c.b16 %v393, %v385
    %v458 = vpack.c.b16 %v394, %v386
    %523 = vmatprep.subr.bf16.mxu0 %v396
    %524 = vmatpush1.bf16.msra.mxu0 %v395
    %525 = vmatprep.subr.bf16.mxu0 %v404
    %526 = vmatpush1.bf16.msra.mxu0 %v403
    %527 = vmatprep.subr.bf16.mxu0 %v412
    %528 = vmatpush1.bf16.msra.mxu0 %v411
    %529 = vmatprep.subr.bf16.mxu0 %v420
    %530 = vmatpush1.bf16.msra.mxu0 %v419
    %531 = vmatprep.subr.bf16.mxu0 %v428
    %532 = vmatpush1.bf16.msra.mxu0 %v427
    %533 = vmatprep.subr.bf16.mxu0 %v436
    %534 = vmatpush1.bf16.msra.mxu0 %v435
    %535 = vmatprep.subr.bf16.mxu0 %v444
    %536 = vmatpush1.bf16.msra.mxu0 %v443
    %537 = vmatprep.subr.bf16.mxu0 %v452
    %538 = vmatpush1.bf16.msra.mxu0 %v451
    %539 = vmatprep.subr.bf16.mxu0 0
    %540 = vmatpush1.bf16.msra.mxu0 0
    %541 = vmatprep.subr.bf16.mxu0 0
    %542 = vmatpush1.bf16.msra.mxu0 0
    %543 = vmatprep.subr.bf16.mxu0 0
    %544 = vmatpush1.bf16.msra.mxu0 0
    %545 = vmatprep.subr.bf16.mxu0 0
    %546 = vmatpush1.bf16.msra.mxu0 0
    %547 = vmatprep.subr.bf16.mxu0 0
    %548 = vmatpush1.bf16.msra.mxu0 0
    %549 = vmatprep.subr.bf16.mxu0 0
    %550 = vmatpush1.bf16.msra.mxu0 0
    %551 = vmatprep.subr.bf16.mxu0 0
    %552 = vmatpush1.bf16.msra.mxu0 0
    %553 = vmatprep.subr.bf16.mxu0 0
    %554 = vmatpush1.bf16.msra.mxu0 0
    %555 = vmatprep.mubr.bf16.mxu0 0
    %556 = vmatmul.mubr.bf16.gmra.mrb[0].mxu0 %v96
    %v557 = vpop.f32.mrb[0].mxu0
    %v558 = vadd.f32 %v166, %v557
    %v559 = vpop.f32.mrb[0].mxu0
    %v560 = vadd.f32 %v170, %v559
    %v561 = vpop.f32.mrb[0].mxu0
    %v562 = vadd.f32 %v166, %v561
    %v563 = vpop.f32.mrb[0].mxu0
    %v564 = vadd.f32 %v170, %v563
    %565 = vdwg.mxu0
    %566 = vmatprep.subr.bf16.mxu0 %v398
    %567 = vmatpush1.bf16.msra.mxu0 %v397
    %568 = vmatprep.subr.bf16.mxu0 %v406
    %569 = vmatpush1.bf16.msra.mxu0 %v405
    %570 = vmatprep.subr.bf16.mxu0 %v414
    %571 = vmatpush1.bf16.msra.mxu0 %v413
    %572 = vmatprep.subr.bf16.mxu0 %v422
    %573 = vmatpush1.bf16.msra.mxu0 %v421
    %574 = vmatprep.subr.bf16.mxu0 %v430
    %575 = vmatpush1.bf16.msra.mxu0 %v429
    %576 = vmatprep.subr.bf16.mxu0 %v438
    %577 = vmatpush1.bf16.msra.mxu0 %v437
    %578 = vmatprep.subr.bf16.mxu0 %v446
    %579 = vmatpush1.bf16.msra.mxu0 %v445
    %580 = vmatprep.subr.bf16.mxu0 %v454
    %581 = vmatpush1.bf16.msra.mxu0 %v453
    %582 = vmatprep.subr.bf16.mxu0 0
    %583 = vmatpush1.bf16.msra.mxu0 0
    %584 = vmatprep.subr.bf16.mxu0 0
    %585 = vmatpush1.bf16.msra.mxu0 0
    %586 = vmatprep.subr.bf16.mxu0 0
    %587 = vmatpush1.bf16.msra.mxu0 0
    %588 = vmatprep.subr.bf16.mxu0 0
    %589 = vmatpush1.bf16.msra.mxu0 0
    %590 = vmatprep.subr.bf16.mxu0 0
    %591 = vmatpush1.bf16.msra.mxu0 0
    %592 = vmatprep.subr.bf16.mxu0 0
    %593 = vmatpush1.bf16.msra.mxu0 0
    %594 = vmatprep.subr.bf16.mxu0 0
    %595 = vmatpush1.bf16.msra.mxu0 0
    %596 = vmatprep.subr.bf16.mxu0 0
    %597 = vmatpush1.bf16.msra.mxu0 0
    %598 = vmatprep.mubr.bf16.mxu0 0
    %599 = vmatmul.mubr.bf16.gmra.mrb[0].mxu0 %v96
    %v600 = vpop.f32.mrb[0].mxu0
    %v601 = vadd.f32 %v174, %v600
    %v602 = vpop.f32.mrb[0].mxu0
    %v603 = vadd.f32 %v178, %v602
    %v604 = vpop.f32.mrb[0].mxu0
    %v605 = vadd.f32 %v174, %v604
    %v606 = vpop.f32.mrb[0].mxu0
    %v607 = vadd.f32 %v178, %v606
    %608 = vdwg.mxu0
    %609 = vmatprep.subr.bf16.mxu0 %v400
    %610 = vmatpush1.bf16.msra.mxu0 %v399
    %611 = vmatprep.subr.bf16.mxu0 %v408
    %612 = vmatpush1.bf16.msra.mxu0 %v407
    %613 = vmatprep.subr.bf16.mxu0 %v416
    %614 = vmatpush1.bf16.msra.mxu0 %v415
    %615 = vmatprep.subr.bf16.mxu0 %v424
    %616 = vmatpush1.bf16.msra.mxu0 %v423
    %617 = vmatprep.subr.bf16.mxu0 %v432
    %618 = vmatpush1.bf16.msra.mxu0 %v431
    %619 = vmatprep.subr.bf16.mxu0 %v440
    %620 = vmatpush1.bf16.msra.mxu0 %v439
    %621 = vmatprep.subr.bf16.mxu0 %v448
    %622 = vmatpush1.bf16.msra.mxu0 %v447
    %623 = vmatprep.subr.bf16.mxu0 %v456
    %624 = vmatpush1.bf16.msra.mxu0 %v455
    %625 = vmatprep.subr.bf16.mxu0 0
    %626 = vmatpush1.bf16.msra.mxu0 0
    %627 = vmatprep.subr.bf16.mxu0 0
    %628 = vmatpush1.bf16.msra.mxu0 0
    %629 = vmatprep.subr.bf16.mxu0 0
    %630 = vmatpush1.bf16.msra.mxu0 0
    %631 = vmatprep.subr.bf16.mxu0 0
    %632 = vmatpush1.bf16.msra.mxu0 0
    %633 = vmatprep.subr.bf16.mxu0 0
    %634 = vmatpush1.bf16.msra.mxu0 0
    %635 = vmatprep.subr.bf16.mxu0 0
    %636 = vmatpush1.bf16.msra.mxu0 0
    %637 = vmatprep.subr.bf16.mxu0 0
    %638 = vmatpush1.bf16.msra.mxu0 0
    %639 = vmatprep.subr.bf16.mxu0 0
    %640 = vmatpush1.bf16.msra.mxu0 0
    %641 = vmatprep.mubr.bf16.mxu0 0
    %642 = vmatmul.mubr.bf16.gmra.mrb[0].mxu0 %v96
    %v643 = vpop.f32.mrb[0].mxu0
    %v644 = vadd.f32 %v182, %v643
    %v645 = vpop.f32.mrb[0].mxu0
    %v646 = vadd.f32 %v186, %v645
    %v647 = vpop.f32.mrb[0].mxu0
    %v648 = vadd.f32 %v182, %v647
    %v649 = vpop.f32.mrb[0].mxu0
    %v650 = vadd.f32 %v186, %v649
    %651 = vdwg.mxu0
    %652 = vmatprep.subr.bf16.mxu0 %v402
    %653 = vmatpush1.bf16.msra.mxu0 %v401
    %654 = vmatprep.subr.bf16.mxu0 %v410
    %655 = vmatpush1.bf16.msra.mxu0 %v409
    %656 = vmatprep.subr.bf16.mxu0 %v418
    %657 = vmatpush1.bf16.msra.mxu0 %v417
    %658 = vmatprep.subr.bf16.mxu0 %v426
    %659 = vmatpush1.bf16.msra.mxu0 %v425
    %660 = vmatprep.subr.bf16.mxu0 %v434
    %661 = vmatpush1.bf16.msra.mxu0 %v433
    %662 = vmatprep.subr.bf16.mxu0 %v442
    %663 = vmatpush1.bf16.msra.mxu0 %v441
    %664 = vmatprep.subr.bf16.mxu0 %v450
    %665 = vmatpush1.bf16.msra.mxu0 %v449
    %666 = vmatprep.subr.bf16.mxu0 %v458
    %667 = vmatpush1.bf16.msra.mxu0 %v457
    %668 = vmatprep.subr.bf16.mxu0 0
    %669 = vmatpush1.bf16.msra.mxu0 0
    %670 = vmatprep.subr.bf16.mxu0 0
    %671 = vmatpush1.bf16.msra.mxu0 0
    %672 = vmatprep.subr.bf16.mxu0 0
    %673 = vmatpush1.bf16.msra.mxu0 0
    %674 = vmatprep.subr.bf16.mxu0 0
    %675 = vmatpush1.bf16.msra.mxu0 0
    %676 = vmatprep.subr.bf16.mxu0 0
    %677 = vmatpush1.bf16.msra.mxu0 0
    %678 = vmatprep.subr.bf16.mxu0 0
    %679 = vmatpush1.bf16.msra.mxu0 0
    %680 = vmatprep.subr.bf16.mxu0 0
    %681 = vmatpush1.bf16.msra.mxu0 0
    %682 = vmatprep.subr.bf16.mxu0 0
    %683 = vmatpush1.bf16.msra.mxu0 0
    %684 = vmatprep.mubr.bf16.mxu0 0
    %685 = vmatmul.mubr.bf16.gmra.mrb[0].mxu0 %v96
    %v686 = vpop.f32.mrb[0].mxu0
    %v687 = vadd.f32 %v190, %v686
    %v688 = vpop.f32.mrb[0].mxu0
    %v689 = vadd.f32 %v194, %v688
    %v690 = vpop.f32.mrb[0].mxu0
    %v691 = vadd.f32 %v190, %v690
    %v692 = vpop.f32.mrb[0].mxu0
    %v693 = vadd.f32 %v194, %v692
    %694 = vdwg.mxu0
    %v695 = vmax.f32 %v558, 0.0
    %v696 = vmax.f32 %v560, 0.0
    %v697 = vmax.f32 %v601, 0.0
    %v698 = vmax.f32 %v603, 0.0
    %v699 = vmax.f32 %v644, 0.0
    %v700 = vmax.f32 %v646, 0.0
    %v701 = vmax.f32 %v687, 0.0
    %v702 = vmax.f32 %v689, 0.0
    %v703 = vmax.f32 %v562, 0.0
    %v704 = vmax.f32 %v564, 0.0
    %v705 = vmax.f32 %v605, 0.0
    %v706 = vmax.f32 %v607, 0.0
    %v707 = vmax.f32 %v648, 0.0
    %v708 = vmax.f32 %v650, 0.0
    %v709 = vmax.f32 %v691, 0.0
    %v710 = vmax.f32 %v693, 0.0
    %v711 = vpack.c.bf16 %v703, %v695
    %v712 = vpack.c.bf16 %v704, %v696
    %v713 = vpack.c.bf16 %v705, %v697
    %v714 = vpack.c.bf16 %v706, %v698
    %v715 = vpack.c.bf16 %v707, %v699
    %v716 = vpack.c.bf16 %v708, %v700
    %v717 = vpack.c.bf16 %v709, %v701
    %v718 = vpack.c.bf16 %v710, %v702
    %v719 = vld [vmem:[#allocation8] sm:$0xff]
    %v720 = vld [vmem:[#allocation8 + $0x8] sm:$0xff]
    %v721 = vld [vmem:[#allocation8 + $0x10] sm:$0xff]
    %v722 = vld [vmem:[#allocation8 + $0x18] sm:$0xff]
    %v723 = vld [vmem:[#allocation8 + $0x20] sm:$0xff]
    %v724 = vld [vmem:[#allocation8 + $0x28] sm:$0xff]
    %v725 = vld [vmem:[#allocation8 + $0x30] sm:$0xff]
    %v726 = vld [vmem:[#allocation8 + $0x38] sm:$0xff]
    %v727 = vld [vmem:[#allocation8 + $0x40] sm:$0xff]
    %v728 = vld [vmem:[#allocation8 + $0x48] sm:$0xff]
    %v729 = vld [vmem:[#allocation8 + $0x50] sm:$0xff]
    %v730 = vld [vmem:[#allocation8 + $0x58] sm:$0xff]
    %v731 = vld [vmem:[#allocation8 + $0x60] sm:$0xff]
    %v732 = vld [vmem:[#allocation8 + $0x68] sm:$0xff]
    %v733 = vld [vmem:[#allocation8 + $0x70] sm:$0xff]
    %v734 = vld [vmem:[#allocation8 + $0x78] sm:$0xff]
    %v735 = vld [vmem:[#allocation8 + $0x80] sm:$0xff]
    %v736 = vld [vmem:[#allocation8 + $0x88] sm:$0xff]
    %v737 = vld [vmem:[#allocation8 + $0x90] sm:$0xff]
    %v738 = vld [vmem:[#allocation8 + $0x98] sm:$0xff]
    %v739 = vld [vmem:[#allocation8 + $0xa0] sm:$0xff]
    %v740 = vld [vmem:[#allocation8 + $0xa8] sm:$0xff]
    %v741 = vld [vmem:[#allocation8 + $0xb0] sm:$0xff]
    %v742 = vld [vmem:[#allocation8 + $0xb8] sm:$0xff]
    %v743 = vld [vmem:[#allocation8 + $0xc0] sm:$0xff]
    %v744 = vld [vmem:[#allocation8 + $0xc8] sm:$0xff]
    %v745 = vld [vmem:[#allocation8 + $0xd0] sm:$0xff]
    %v746 = vld [vmem:[#allocation8 + $0xd8] sm:$0xff]
    %v747 = vld [vmem:[#allocation8 + $0xe0] sm:$0xff]
    %v748 = vld [vmem:[#allocation8 + $0xe8] sm:$0xff]
    %v749 = vld [vmem:[#allocation8 + $0xf0] sm:$0xff]
    %v750 = vld [vmem:[#allocation8 + $0xf8] sm:$0xff]
    %v751 = vld [vmem:[#allocation8 + $0x100] sm:$0xff]
    %v752 = vld [vmem:[#allocation8 + $0x108] sm:$0xff]
    %v753 = vld [vmem:[#allocation8 + $0x110] sm:$0xff]
    %v754 = vld [vmem:[#allocation8 + $0x118] sm:$0xff]
    %v755 = vld [vmem:[#allocation8 + $0x120] sm:$0xff]
    %v756 = vld [vmem:[#allocation8 + $0x128] sm:$0xff]
    %v757 = vld [vmem:[#allocation8 + $0x130] sm:$0xff]
    %v758 = vld [vmem:[#allocation8 + $0x138] sm:$0xff]
    %v759 = vld [vmem:[#allocation8 + $0x140] sm:$0xff]
    %v760 = vld [vmem:[#allocation8 + $0x148] sm:$0xff]
    %v761 = vld [vmem:[#allocation8 + $0x150] sm:$0xff]
    %v762 = vld [vmem:[#allocation8 + $0x158] sm:$0xff]
    %v763 = vld [vmem:[#allocation8 + $0x160] sm:$0xff]
    %v764 = vld [vmem:[#allocation8 + $0x168] sm:$0xff]
    %v765 = vld [vmem:[#allocation8 + $0x170] sm:$0xff]
    %v766 = vld [vmem:[#allocation8 + $0x178] sm:$0xff]
    %v767 = vld [vmem:[#allocation8 + $0x180] sm:$0xff]
    %v768 = vld [vmem:[#allocation8 + $0x188] sm:$0xff]
    %v769 = vld [vmem:[#allocation8 + $0x190] sm:$0xff]
    %v770 = vld [vmem:[#allocation8 + $0x198] sm:$0xff]
    %v771 = vld [vmem:[#allocation8 + $0x1a0] sm:$0xff]
    %v772 = vld [vmem:[#allocation8 + $0x1a8] sm:$0xff]
    %v773 = vld [vmem:[#allocation8 + $0x1b0] sm:$0xff]
    %v774 = vld [vmem:[#allocation8 + $0x1b8] sm:$0xff]
    %v775 = vld [vmem:[#allocation8 + $0x1c0] sm:$0xff]
    %v776 = vld [vmem:[#allocation8 + $0x1c8] sm:$0xff]
    %v777 = vld [vmem:[#allocation8 + $0x1d0] sm:$0xff]
    %v778 = vld [vmem:[#allocation8 + $0x1d8] sm:$0xff]
    %v779 = vld [vmem:[#allocation8 + $0x1e0] sm:$0xff]
    %v780 = vld [vmem:[#allocation8 + $0x1e8] sm:$0xff]
    %v781 = vld [vmem:[#allocation8 + $0x1f0] sm:$0xff]
    %v782 = vld [vmem:[#allocation8 + $0x1f8] sm:$0xff]
    %v783 = vld [vmem:[#allocation8 + $0x200] sm:$0xff]
    %v784 = vld [vmem:[#allocation8 + $0x208] sm:$0xff]
    %v785 = vld [vmem:[#allocation8 + $0x210] sm:$0xff]
    %v786 = vld [vmem:[#allocation8 + $0x218] sm:$0xff]
    %v787 = vld [vmem:[#allocation8 + $0x220] sm:$0xff]
    %v788 = vld [vmem:[#allocation8 + $0x228] sm:$0xff]
    %v789 = vld [vmem:[#allocation8 + $0x230] sm:$0xff]
    %v790 = vld [vmem:[#allocation8 + $0x238] sm:$0xff]
    %v791 = vld [vmem:[#allocation8 + $0x240] sm:$0xff]
    %v792 = vld [vmem:[#allocation8 + $0x248] sm:$0xff]
    %v793 = vld [vmem:[#allocation8 + $0x250] sm:$0xff]
    %v794 = vld [vmem:[#allocation8 + $0x258] sm:$0xff]
    %v795 = vld [vmem:[#allocation8 + $0x260] sm:$0xff]
    %v796 = vld [vmem:[#allocation8 + $0x268] sm:$0xff]
    %v797 = vld [vmem:[#allocation8 + $0x270] sm:$0xff]
    %v798 = vld [vmem:[#allocation8 + $0x278] sm:$0xff]
    %v799 = vld [vmem:[#allocation8 + $0x280] sm:$0xff]
    %v800 = vld [vmem:[#allocation8 + $0x288] sm:$0xff]
    %v801 = vld [vmem:[#allocation8 + $0x290] sm:$0xff]
    %v802 = vld [vmem:[#allocation8 + $0x298] sm:$0xff]
    %v803 = vld [vmem:[#allocation8 + $0x2a0] sm:$0xff]
    %v804 = vld [vmem:[#allocation8 + $0x2a8] sm:$0xff]
    %v805 = vld [vmem:[#allocation8 + $0x2b0] sm:$0xff]
    %v806 = vld [vmem:[#allocation8 + $0x2b8] sm:$0xff]
    %v807 = vld [vmem:[#allocation8 + $0x2c0] sm:$0xff]
    %v808 = vld [vmem:[#allocation8 + $0x2c8] sm:$0xff]
    %v809 = vld [vmem:[#allocation8 + $0x2d0] sm:$0xff]
    %v810 = vld [vmem:[#allocation8 + $0x2d8] sm:$0xff]
    %v811 = vld [vmem:[#allocation8 + $0x2e0] sm:$0xff]
    %v812 = vld [vmem:[#allocation8 + $0x2e8] sm:$0xff]
    %v813 = vld [vmem:[#allocation8 + $0x2f0] sm:$0xff]
    %v814 = vld [vmem:[#allocation8 + $0x2f8] sm:$0xff]
    %v815 = vld [vmem:[#allocation8 + $0x300] sm:$0xff]
    %v816 = vld [vmem:[#allocation8 + $0x308] sm:$0xff]
    %v817 = vld [vmem:[#allocation8 + $0x310] sm:$0xff]
    %v818 = vld [vmem:[#allocation8 + $0x318] sm:$0xff]
    %v819 = vld [vmem:[#allocation8 + $0x320] sm:$0xff]
    %v820 = vld [vmem:[#allocation8 + $0x328] sm:$0xff]
    %v821 = vld [vmem:[#allocation8 + $0x330] sm:$0xff]
    %v822 = vld [vmem:[#allocation8 + $0x338] sm:$0xff]
    %v823 = vld [vmem:[#allocation8 + $0x340] sm:$0xff]
    %v824 = vld [vmem:[#allocation8 + $0x348] sm:$0xff]
    %v825 = vld [vmem:[#allocation8 + $0x350] sm:$0xff]
    %v826 = vld [vmem:[#allocation8 + $0x358] sm:$0xff]
    %v827 = vld [vmem:[#allocation8 + $0x360] sm:$0xff]
    %v828 = vld [vmem:[#allocation8 + $0x368] sm:$0xff]
    %v829 = vld [vmem:[#allocation8 + $0x370] sm:$0xff]
    %v830 = vld [vmem:[#allocation8 + $0x378] sm:$0xff]
    %v831 = vld [vmem:[#allocation8 + $0x380] sm:$0xff]
    %v832 = vld [vmem:[#allocation8 + $0x388] sm:$0xff]
    %v833 = vld [vmem:[#allocation8 + $0x390] sm:$0xff]
    %v834 = vld [vmem:[#allocation8 + $0x398] sm:$0xff]
    %v835 = vld [vmem:[#allocation8 + $0x3a0] sm:$0xff]
    %v836 = vld [vmem:[#allocation8 + $0x3a8] sm:$0xff]
    %v837 = vld [vmem:[#allocation8 + $0x3b0] sm:$0xff]
    %v838 = vld [vmem:[#allocation8 + $0x3b8] sm:$0xff]
    %v839 = vld [vmem:[#allocation8 + $0x3c0] sm:$0xff]
    %v840 = vld [vmem:[#allocation8 + $0x3c8] sm:$0xff]
    %v841 = vld [vmem:[#allocation8 + $0x3d0] sm:$0xff]
    %v842 = vld [vmem:[#allocation8 + $0x3d8] sm:$0xff]
    %v843 = vld [vmem:[#allocation8 + $0x3e0] sm:$0xff]
    %v844 = vld [vmem:[#allocation8 + $0x3e8] sm:$0xff]
    %v845 = vld [vmem:[#allocation8 + $0x3f0] sm:$0xff]
    %v846 = vld [vmem:[#allocation8 + $0x3f8] sm:$0xff]
    %v847 = vld [vmem:[%s4] sm:$0x3]
    %v849 = vlaneseq
    %v850 = vshrl.u32 %v849, 7
    %v851 = vsub.s32 0, %v850
    %v852 = vrot.slane %v847, %v851
    %v853 = vlaneseq
    %v854 = vshrl.u32 %v853, 7
    %v855 = vsub.s32 1, %v854
    %v856 = vrot.slane %v847, %v855
    %v987 = vunpack.c.l.b16 %v719
    %v988 = vunpack.c.h.b16 %v719
    %v989 = vunpack.c.l.b16 %v720
    %v990 = vunpack.c.h.b16 %v720
    %v991 = vunpack.c.l.b16 %v721
    %v992 = vunpack.c.h.b16 %v721
    %v993 = vunpack.c.l.b16 %v722
    %v994 = vunpack.c.h.b16 %v722
    %v995 = vunpack.c.l.b16 %v723
    %v996 = vunpack.c.h.b16 %v723
    %v997 = vunpack.c.l.b16 %v724
    %v998 = vunpack.c.h.b16 %v724
    %v999 = vunpack.c.l.b16 %v725
    %v1000 = vunpack.c.h.b16 %v725
    %v1001 = vunpack.c.l.b16 %v726
    %v1002 = vunpack.c.h.b16 %v726
    %v1003 = vunpack.c.l.b16 %v727
    %v1004 = vunpack.c.h.b16 %v727
    %v1005 = vunpack.c.l.b16 %v728
    %v1006 = vunpack.c.h.b16 %v728
    %v1007 = vunpack.c.l.b16 %v729
    %v1008 = vunpack.c.h.b16 %v729
    %v1009 = vunpack.c.l.b16 %v730
    %v1010 = vunpack.c.h.b16 %v730
    %v1011 = vunpack.c.l.b16 %v731
    %v1012 = vunpack.c.h.b16 %v731
    %v1013 = vunpack.c.l.b16 %v732
    %v1014 = vunpack.c.h.b16 %v732
    %v1015 = vunpack.c.l.b16 %v733
    %v1016 = vunpack.c.h.b16 %v733
    %v1017 = vunpack.c.l.b16 %v734
    %v1018 = vunpack.c.h.b16 %v734
    %v1019 = vunpack.c.l.b16 %v735
    %v1020 = vunpack.c.h.b16 %v735
    %v1021 = vunpack.c.l.b16 %v736
    %v1022 = vunpack.c.h.b16 %v736
    %v1023 = vunpack.c.l.b16 %v737
    %v1024 = vunpack.c.h.b16 %v737
    %v1025 = vunpack.c.l.b16 %v738
    %v1026 = vunpack.c.h.b16 %v738
    %v1027 = vunpack.c.l.b16 %v739
    %v1028 = vunpack.c.h.b16 %v739
    %v1029 = vunpack.c.l.b16 %v740
    %v1030 = vunpack.c.h.b16 %v740
    %v1031 = vunpack.c.l.b16 %v741
    %v1032 = vunpack.c.h.b16 %v741
    %v1033 = vunpack.c.l.b16 %v742
    %v1034 = vunpack.c.h.b16 %v742
    %v1035 = vunpack.c.l.b16 %v743
    %v1036 = vunpack.c.h.b16 %v743
    %v1037 = vunpack.c.l.b16 %v744
    %v1038 = vunpack.c.h.b16 %v744
    %v1039 = vunpack.c.l.b16 %v745
    %v1040 = vunpack.c.h.b16 %v745
    %v1041 = vunpack.c.l.b16 %v746
    %v1042 = vunpack.c.h.b16 %v746
    %v1043 = vunpack.c.l.b16 %v747
    %v1044 = vunpack.c.h.b16 %v747
    %v1045 = vunpack.c.l.b16 %v748
    %v1046 = vunpack.c.h.b16 %v748
    %v1047 = vunpack.c.l.b16 %v749
    %v1048 = vunpack.c.h.b16 %v749
    %v1049 = vunpack.c.l.b16 %v750
    %v1050 = vunpack.c.h.b16 %v750
    %v1051 = vunpack.c.l.b16 %v751
    %v1052 = vunpack.c.h.b16 %v751
    %v1053 = vunpack.c.l.b16 %v752
    %v1054 = vunpack.c.h.b16 %v752
    %v1055 = vunpack.c.l.b16 %v753
    %v1056 = vunpack.c.h.b16 %v753
    %v1057 = vunpack.c.l.b16 %v754
    %v1058 = vunpack.c.h.b16 %v754
    %v1059 = vunpack.c.l.b16 %v755
    %v1060 = vunpack.c.h.b16 %v755
    %v1061 = vunpack.c.l.b16 %v756
    %v1062 = vunpack.c.h.b16 %v756
    %v1063 = vunpack.c.l.b16 %v757
    %v1064 = vunpack.c.h.b16 %v757
    %v1065 = vunpack.c.l.b16 %v758
    %v1066 = vunpack.c.h.b16 %v758
    %v1067 = vunpack.c.l.b16 %v759
    %v1068 = vunpack.c.h.b16 %v759
    %v1069 = vunpack.c.l.b16 %v760
    %v1070 = vunpack.c.h.b16 %v760
    %v1071 = vunpack.c.l.b16 %v761
    %v1072 = vunpack.c.h.b16 %v761
    %v1073 = vunpack.c.l.b16 %v762
    %v1074 = vunpack.c.h.b16 %v762
    %v1075 = vunpack.c.l.b16 %v763
    %v1076 = vunpack.c.h.b16 %v763
    %v1077 = vunpack.c.l.b16 %v764
    %v1078 = vunpack.c.h.b16 %v764
    %v1079 = vunpack.c.l.b16 %v765
    %v1080 = vunpack.c.h.b16 %v765
    %v1081 = vunpack.c.l.b16 %v766
    %v1082 = vunpack.c.h.b16 %v766
    %v1083 = vunpack.c.l.b16 %v767
    %v1084 = vunpack.c.h.b16 %v767
    %v1085 = vunpack.c.l.b16 %v768
    %v1086 = vunpack.c.h.b16 %v768
    %v1087 = vunpack.c.l.b16 %v769
    %v1088 = vunpack.c.h.b16 %v769
    %v1089 = vunpack.c.l.b16 %v770
    %v1090 = vunpack.c.h.b16 %v770
    %v1091 = vunpack.c.l.b16 %v771
    %v1092 = vunpack.c.h.b16 %v771
    %v1093 = vunpack.c.l.b16 %v772
    %v1094 = vunpack.c.h.b16 %v772
    %v1095 = vunpack.c.l.b16 %v773
    %v1096 = vunpack.c.h.b16 %v773
    %v1097 = vunpack.c.l.b16 %v774
    %v1098 = vunpack.c.h.b16 %v774
    %v1099 = vunpack.c.l.b16 %v775
    %v1100 = vunpack.c.h.b16 %v775
    %v1101 = vunpack.c.l.b16 %v776
    %v1102 = vunpack.c.h.b16 %v776
    %v1103 = vunpack.c.l.b16 %v777
    %v1104 = vunpack.c.h.b16 %v777
    %v1105 = vunpack.c.l.b16 %v778
    %v1106 = vunpack.c.h.b16 %v778
    %v1107 = vunpack.c.l.b16 %v779
    %v1108 = vunpack.c.h.b16 %v779
    %v1109 = vunpack.c.l.b16 %v780
    %v1110 = vunpack.c.h.b16 %v780
    %v1111 = vunpack.c.l.b16 %v781
    %v1112 = vunpack.c.h.b16 %v781
    %v1113 = vunpack.c.l.b16 %v782
    %v1114 = vunpack.c.h.b16 %v782
    %v1115 = vunpack.c.l.b16 %v783
    %v1116 = vunpack.c.h.b16 %v783
    %v1117 = vunpack.c.l.b16 %v784
    %v1118 = vunpack.c.h.b16 %v784
    %v1119 = vunpack.c.l.b16 %v785
    %v1120 = vunpack.c.h.b16 %v785
    %v1121 = vunpack.c.l.b16 %v786
    %v1122 = vunpack.c.h.b16 %v786
    %v1123 = vunpack.c.l.b16 %v787
    %v1124 = vunpack.c.h.b16 %v787
    %v1125 = vunpack.c.l.b16 %v788
    %v1126 = vunpack.c.h.b16 %v788
    %v1127 = vunpack.c.l.b16 %v789
    %v1128 = vunpack.c.h.b16 %v789
    %v1129 = vunpack.c.l.b16 %v790
    %v1130 = vunpack.c.h.b16 %v790
    %v1131 = vunpack.c.l.b16 %v791
    %v1132 = vunpack.c.h.b16 %v791
    %v1133 = vunpack.c.l.b16 %v792
    %v1134 = vunpack.c.h.b16 %v792
    %v1135 = vunpack.c.l.b16 %v793
    %v1136 = vunpack.c.h.b16 %v793
    %v1137 = vunpack.c.l.b16 %v794
    %v1138 = vunpack.c.h.b16 %v794
    %v1139 = vunpack.c.l.b16 %v795
    %v1140 = vunpack.c.h.b16 %v795
    %v1141 = vunpack.c.l.b16 %v796
    %v1142 = vunpack.c.h.b16 %v796
    %v1143 = vunpack.c.l.b16 %v797
    %v1144 = vunpack.c.h.b16 %v797
    %v1145 = vunpack.c.l.b16 %v798
    %v1146 = vunpack.c.h.b16 %v798
    %v1147 = vunpack.c.l.b16 %v799
    %v1148 = vunpack.c.h.b16 %v799
    %v1149 = vunpack.c.l.b16 %v800
    %v1150 = vunpack.c.h.b16 %v800
    %v1151 = vunpack.c.l.b16 %v801
    %v1152 = vunpack.c.h.b16 %v801
    %v1153 = vunpack.c.l.b16 %v802
    %v1154 = vunpack.c.h.b16 %v802
    %v1155 = vunpack.c.l.b16 %v803
    %v1156 = vunpack.c.h.b16 %v803
    %v1157 = vunpack.c.l.b16 %v804
    %v1158 = vunpack.c.h.b16 %v804
    %v1159 = vunpack.c.l.b16 %v805
    %v1160 = vunpack.c.h.b16 %v805
    %v1161 = vunpack.c.l.b16 %v806
    %v1162 = vunpack.c.h.b16 %v806
    %v1163 = vunpack.c.l.b16 %v807
    %v1164 = vunpack.c.h.b16 %v807
    %v1165 = vunpack.c.l.b16 %v808
    %v1166 = vunpack.c.h.b16 %v808
    %v1167 = vunpack.c.l.b16 %v809
    %v1168 = vunpack.c.h.b16 %v809
    %v1169 = vunpack.c.l.b16 %v810
    %v1170 = vunpack.c.h.b16 %v810
    %v1171 = vunpack.c.l.b16 %v811
    %v1172 = vunpack.c.h.b16 %v811
    %v1173 = vunpack.c.l.b16 %v812
    %v1174 = vunpack.c.h.b16 %v812
    %v1175 = vunpack.c.l.b16 %v813
    %v1176 = vunpack.c.h.b16 %v813
    %v1177 = vunpack.c.l.b16 %v814
    %v1178 = vunpack.c.h.b16 %v814
    %v1179 = vunpack.c.l.b16 %v815
    %v1180 = vunpack.c.h.b16 %v815
    %v1181 = vunpack.c.l.b16 %v816
    %v1182 = vunpack.c.h.b16 %v816
    %v1183 = vunpack.c.l.b16 %v817
    %v1184 = vunpack.c.h.b16 %v817
    %v1185 = vunpack.c.l.b16 %v818
    %v1186 = vunpack.c.h.b16 %v818
    %v1187 = vunpack.c.l.b16 %v819
    %v1188 = vunpack.c.h.b16 %v819
    %v1189 = vunpack.c.l.b16 %v820
    %v1190 = vunpack.c.h.b16 %v820
    %v1191 = vunpack.c.l.b16 %v821
    %v1192 = vunpack.c.h.b16 %v821
    %v1193 = vunpack.c.l.b16 %v822
    %v1194 = vunpack.c.h.b16 %v822
    %v1195 = vunpack.c.l.b16 %v823
    %v1196 = vunpack.c.h.b16 %v823
    %v1197 = vunpack.c.l.b16 %v824
    %v1198 = vunpack.c.h.b16 %v824
    %v1199 = vunpack.c.l.b16 %v825
    %v1200 = vunpack.c.h.b16 %v825
    %v1201 = vunpack.c.l.b16 %v826
    %v1202 = vunpack.c.h.b16 %v826
    %v1203 = vunpack.c.l.b16 %v827
    %v1204 = vunpack.c.h.b16 %v827
    %v1205 = vunpack.c.l.b16 %v828
    %v1206 = vunpack.c.h.b16 %v828
    %v1207 = vunpack.c.l.b16 %v829
    %v1208 = vunpack.c.h.b16 %v829
    %v1209 = vunpack.c.l.b16 %v830
    %v1210 = vunpack.c.h.b16 %v830
    %v1211 = vunpack.c.l.b16 %v831
    %v1212 = vunpack.c.h.b16 %v831
    %v1213 = vunpack.c.l.b16 %v832
    %v1214 = vunpack.c.h.b16 %v832
    %v1215 = vunpack.c.l.b16 %v833
    %v1216 = vunpack.c.h.b16 %v833
    %v1217 = vunpack.c.l.b16 %v834
    %v1218 = vunpack.c.h.b16 %v834
    %v1219 = vunpack.c.l.b16 %v835
    %v1220 = vunpack.c.h.b16 %v835
    %v1221 = vunpack.c.l.b16 %v836
    %v1222 = vunpack.c.h.b16 %v836
    %v1223 = vunpack.c.l.b16 %v837
    %v1224 = vunpack.c.h.b16 %v837
    %v1225 = vunpack.c.l.b16 %v838
    %v1226 = vunpack.c.h.b16 %v838
    %v1227 = vunpack.c.l.b16 %v839
    %v1228 = vunpack.c.h.b16 %v839
    %v1229 = vunpack.c.l.b16 %v840
    %v1230 = vunpack.c.h.b16 %v840
    %v1231 = vunpack.c.l.b16 %v841
    %v1232 = vunpack.c.h.b16 %v841
    %v1233 = vunpack.c.l.b16 %v842
    %v1234 = vunpack.c.h.b16 %v842
    %v1235 = vunpack.c.l.b16 %v843
    %v1236 = vunpack.c.h.b16 %v843
    %v1237 = vunpack.c.l.b16 %v844
    %v1238 = vunpack.c.h.b16 %v844
    %v1239 = vunpack.c.l.b16 %v845
    %v1240 = vunpack.c.h.b16 %v845
    %v1241 = vunpack.c.l.b16 %v846
    %v1242 = vunpack.c.h.b16 %v846
    %v1243 = vpack.c.b16 %v989, %v987
    %v1244 = vpack.c.b16 %v990, %v988
    %v1245 = vpack.c.b16 %v993, %v991
    %v1246 = vpack.c.b16 %v994, %v992
    %v1247 = vpack.c.b16 %v997, %v995
    %v1248 = vpack.c.b16 %v998, %v996
    %v1249 = vpack.c.b16 %v1001, %v999
    %v1250 = vpack.c.b16 %v1002, %v1000
    %v1251 = vpack.c.b16 %v1005, %v1003
    %v1252 = vpack.c.b16 %v1006, %v1004
    %v1253 = vpack.c.b16 %v1009, %v1007
    %v1254 = vpack.c.b16 %v1010, %v1008
    %v1255 = vpack.c.b16 %v1013, %v1011
    %v1256 = vpack.c.b16 %v1014, %v1012
    %v1257 = vpack.c.b16 %v1017, %v1015
    %v1258 = vpack.c.b16 %v1018, %v1016
    %v1259 = vpack.c.b16 %v1021, %v1019
    %v1260 = vpack.c.b16 %v1022, %v1020
    %v1261 = vpack.c.b16 %v1025, %v1023
    %v1262 = vpack.c.b16 %v1026, %v1024
    %v1263 = vpack.c.b16 %v1029, %v1027
    %v1264 = vpack.c.b16 %v1030, %v1028
    %v1265 = vpack.c.b16 %v1033, %v1031
    %v1266 = vpack.c.b16 %v1034, %v1032
    %v1267 = vpack.c.b16 %v1037, %v1035
    %v1268 = vpack.c.b16 %v1038, %v1036
    %v1269 = vpack.c.b16 %v1041, %v1039
    %v1270 = vpack.c.b16 %v1042, %v1040
    %v1271 = vpack.c.b16 %v1045, %v1043
    %v1272 = vpack.c.b16 %v1046, %v1044
    %v1273 = vpack.c.b16 %v1049, %v1047
    %v1274 = vpack.c.b16 %v1050, %v1048
    %v1275 = vpack.c.b16 %v1053, %v1051
    %v1276 = vpack.c.b16 %v1054, %v1052
    %v1277 = vpack.c.b16 %v1057, %v1055
    %v1278 = vpack.c.b16 %v1058, %v1056
    %v1279 = vpack.c.b16 %v1061, %v1059
    %v1280 = vpack.c.b16 %v1062, %v1060
    %v1281 = vpack.c.b16 %v1065, %v1063
    %v1282 = vpack.c.b16 %v1066, %v1064
    %v1283 = vpack.c.b16 %v1069, %v1067
    %v1284 = vpack.c.b16 %v1070, %v1068
    %v1285 = vpack.c.b16 %v1073, %v1071
    %v1286 = vpack.c.b16 %v1074, %v1072
    %v1287 = vpack.c.b16 %v1077, %v1075
    %v1288 = vpack.c.b16 %v1078, %v1076
    %v1289 = vpack.c.b16 %v1081, %v1079
    %v1290 = vpack.c.b16 %v1082, %v1080
    %v1291 = vpack.c.b16 %v1085, %v1083
    %v1292 = vpack.c.b16 %v1086, %v1084
    %v1293 = vpack.c.b16 %v1089, %v1087
    %v1294 = vpack.c.b16 %v1090, %v1088
    %v1295 = vpack.c.b16 %v1093, %v1091
    %v1296 = vpack.c.b16 %v1094, %v1092
    %v1297 = vpack.c.b16 %v1097, %v1095
    %v1298 = vpack.c.b16 %v1098, %v1096
    %v1299 = vpack.c.b16 %v1101, %v1099
    %v1300 = vpack.c.b16 %v1102, %v1100
    %v1301 = vpack.c.b16 %v1105, %v1103
    %v1302 = vpack.c.b16 %v1106, %v1104
    %v1303 = vpack.c.b16 %v1109, %v1107
    %v1304 = vpack.c.b16 %v1110, %v1108
    %v1305 = vpack.c.b16 %v1113, %v1111
    %v1306 = vpack.c.b16 %v1114, %v1112
    %v1307 = vpack.c.b16 %v1117, %v1115
    %v1308 = vpack.c.b16 %v1118, %v1116
    %v1309 = vpack.c.b16 %v1121, %v1119
    %v1310 = vpack.c.b16 %v1122, %v1120
    %v1311 = vpack.c.b16 %v1125, %v1123
    %v1312 = vpack.c.b16 %v1126, %v1124
    %v1313 = vpack.c.b16 %v1129, %v1127
    %v1314 = vpack.c.b16 %v1130, %v1128
    %v1315 = vpack.c.b16 %v1133, %v1131
    %v1316 = vpack.c.b16 %v1134, %v1132
    %v1317 = vpack.c.b16 %v1137, %v1135
    %v1318 = vpack.c.b16 %v1138, %v1136
    %v1319 = vpack.c.b16 %v1141, %v1139
    %v1320 = vpack.c.b16 %v1142, %v1140
    %v1321 = vpack.c.b16 %v1145, %v1143
    %v1322 = vpack.c.b16 %v1146, %v1144
    %v1323 = vpack.c.b16 %v1149, %v1147
    %v1324 = vpack.c.b16 %v1150, %v1148
    %v1325 = vpack.c.b16 %v1153, %v1151
    %v1326 = vpack.c.b16 %v1154, %v1152
    %v1327 = vpack.c.b16 %v1157, %v1155
    %v1328 = vpack.c.b16 %v1158, %v1156
    %v1329 = vpack.c.b16 %v1161, %v1159
    %v1330 = vpack.c.b16 %v1162, %v1160
    %v1331 = vpack.c.b16 %v1165, %v1163
    %v1332 = vpack.c.b16 %v1166, %v1164
    %v1333 = vpack.c.b16 %v1169, %v1167
    %v1334 = vpack.c.b16 %v1170, %v1168
    %v1335 = vpack.c.b16 %v1173, %v1171
    %v1336 = vpack.c.b16 %v1174, %v1172
    %v1337 = vpack.c.b16 %v1177, %v1175
    %v1338 = vpack.c.b16 %v1178, %v1176
    %v1339 = vpack.c.b16 %v1181, %v1179
    %v1340 = vpack.c.b16 %v1182, %v1180
    %v1341 = vpack.c.b16 %v1185, %v1183
    %v1342 = vpack.c.b16 %v1186, %v1184
    %v1343 = vpack.c.b16 %v1189, %v1187
    %v1344 = vpack.c.b16 %v1190, %v1188
    %v1345 = vpack.c.b16 %v1193, %v1191
    %v1346 = vpack.c.b16 %v1194, %v1192
    %v1347 = vpack.c.b16 %v1197, %v1195
    %v1348 = vpack.c.b16 %v1198, %v1196
    %v1349 = vpack.c.b16 %v1201, %v1199
    %v1350 = vpack.c.b16 %v1202, %v1200
    %v1351 = vpack.c.b16 %v1205, %v1203
    %v1352 = vpack.c.b16 %v1206, %v1204
    %v1353 = vpack.c.b16 %v1209, %v1207
    %v1354 = vpack.c.b16 %v1210, %v1208
    %v1355 = vpack.c.b16 %v1213, %v1211
    %v1356 = vpack.c.b16 %v1214, %v1212
    %v1357 = vpack.c.b16 %v1217, %v1215
    %v1358 = vpack.c.b16 %v1218, %v1216
    %v1359 = vpack.c.b16 %v1221, %v1219
    %v1360 = vpack.c.b16 %v1222, %v1220
    %v1361 = vpack.c.b16 %v1225, %v1223
    %v1362 = vpack.c.b16 %v1226, %v1224
    %v1363 = vpack.c.b16 %v1229, %v1227
    %v1364 = vpack.c.b16 %v1230, %v1228
    %v1365 = vpack.c.b16 %v1233, %v1231
    %v1366 = vpack.c.b16 %v1234, %v1232
    %v1367 = vpack.c.b16 %v1237, %v1235
    %v1368 = vpack.c.b16 %v1238, %v1236
    %v1369 = vpack.c.b16 %v1241, %v1239
    %v1370 = vpack.c.b16 %v1242, %v1240
    %1499 = vmatprep.subr.bf16.mxu0 %v1244
    %1500 = vmatpush1.bf16.msra.mxu0 %v1243
    %1501 = vmatprep.subr.bf16.mxu0 %v1246
    %1502 = vmatpush1.bf16.msra.mxu0 %v1245
    %1503 = vmatprep.subr.bf16.mxu0 %v1248
    %1504 = vmatpush1.bf16.msra.mxu0 %v1247
    %1505 = vmatprep.subr.bf16.mxu0 %v1250
    %1506 = vmatpush1.bf16.msra.mxu0 %v1249
    %1507 = vmatprep.subr.bf16.mxu0 %v1252
    %1508 = vmatpush1.bf16.msra.mxu0 %v1251
    %1509 = vmatprep.subr.bf16.mxu0 %v1254
    %1510 = vmatpush1.bf16.msra.mxu0 %v1253
    %1511 = vmatprep.subr.bf16.mxu0 %v1256
    %1512 = vmatpush1.bf16.msra.mxu0 %v1255
    %1513 = vmatprep.subr.bf16.mxu0 %v1258
    %1514 = vmatpush1.bf16.msra.mxu0 %v1257
    %1515 = vmatprep.subr.bf16.mxu0 %v1260
    %1516 = vmatpush1.bf16.msra.mxu0 %v1259
    %1517 = vmatprep.subr.bf16.mxu0 %v1262
    %1518 = vmatpush1.bf16.msra.mxu0 %v1261
    %1519 = vmatprep.subr.bf16.mxu0 %v1264
    %1520 = vmatpush1.bf16.msra.mxu0 %v1263
    %1521 = vmatprep.subr.bf16.mxu0 %v1266
    %1522 = vmatpush1.bf16.msra.mxu0 %v1265
    %1523 = vmatprep.subr.bf16.mxu0 %v1268
    %1524 = vmatpush1.bf16.msra.mxu0 %v1267
    %1525 = vmatprep.subr.bf16.mxu0 %v1270
    %1526 = vmatpush1.bf16.msra.mxu0 %v1269
    %1527 = vmatprep.subr.bf16.mxu0 %v1272
    %1528 = vmatpush1.bf16.msra.mxu0 %v1271
    %1529 = vmatprep.subr.bf16.mxu0 %v1274
    %1530 = vmatpush1.bf16.msra.mxu0 %v1273
    %1531 = vmatprep.mubr.bf16.mxu0 %v712
    %1532 = vmatmul.mubr.bf16.gmra.mrb[0].mxu0 %v711
    %v1533 = vpop.f32.mrb[0].mxu0
    %v1534 = vadd.f32 %v852, %v1533
    %v1535 = vpop.f32.mrb[0].mxu0
    %v1536 = vadd.f32 %v856, %v1535
    %v1537 = vpop.f32.mrb[0].mxu0
    %v1538 = vadd.f32 %v852, %v1537
    %v1539 = vpop.f32.mrb[0].mxu0
    %v1540 = vadd.f32 %v856, %v1539
    %1541 = vdwg.mxu0
    %1542 = vmatprep.subr.bf16.mxu0 %v1276
    %1543 = vmatpush1.bf16.msra.mxu0 %v1275
    %1544 = vmatprep.subr.bf16.mxu0 %v1278
    %1545 = vmatpush1.bf16.msra.mxu0 %v1277
    %1546 = vmatprep.subr.bf16.mxu0 %v1280
    %1547 = vmatpush1.bf16.msra.mxu0 %v1279
    %1548 = vmatprep.subr.bf16.mxu0 %v1282
    %1549 = vmatpush1.bf16.msra.mxu0 %v1281
    %1550 = vmatprep.subr.bf16.mxu0 %v1284
    %1551 = vmatpush1.bf16.msra.mxu0 %v1283
    %1552 = vmatprep.subr.bf16.mxu0 %v1286
    %1553 = vmatpush1.bf16.msra.mxu0 %v1285
    %1554 = vmatprep.subr.bf16.mxu0 %v1288
    %1555 = vmatpush1.bf16.msra.mxu0 %v1287
    %1556 = vmatprep.subr.bf16.mxu0 %v1290
    %1557 = vmatpush1.bf16.msra.mxu0 %v1289
    %1558 = vmatprep.subr.bf16.mxu0 %v1292
    %1559 = vmatpush1.bf16.msra.mxu0 %v1291
    %1560 = vmatprep.subr.bf16.mxu0 %v1294
    %1561 = vmatpush1.bf16.msra.mxu0 %v1293
    %1562 = vmatprep.subr.bf16.mxu0 %v1296
    %1563 = vmatpush1.bf16.msra.mxu0 %v1295
    %1564 = vmatprep.subr.bf16.mxu0 %v1298
    %1565 = vmatpush1.bf16.msra.mxu0 %v1297
    %1566 = vmatprep.subr.bf16.mxu0 %v1300
    %1567 = vmatpush1.bf16.msra.mxu0 %v1299
    %1568 = vmatprep.subr.bf16.mxu0 %v1302
    %1569 = vmatpush1.bf16.msra.mxu0 %v1301
    %1570 = vmatprep.subr.bf16.mxu0 %v1304
    %1571 = vmatpush1.bf16.msra.mxu0 %v1303
    %1572 = vmatprep.subr.bf16.mxu0 %v1306
    %1573 = vmatpush1.bf16.msra.mxu0 %v1305
    %1574 = vmatprep.mubr.bf16.mxu0 %v714
    %1575 = vmatmul.mubr.bf16.gmra.mrb[0].mxu0 %v713
    %v1576 = vpop.f32.mrb[0].mxu0
    %v1577 = vadd.f32 %v1534, %v1576
    %v1578 = vpop.f32.mrb[0].mxu0
    %v1579 = vadd.f32 %v1536, %v1578
    %v1580 = vpop.f32.mrb[0].mxu0
    %v1581 = vadd.f32 %v1538, %v1580
    %v1582 = vpop.f32.mrb[0].mxu0
    %v1583 = vadd.f32 %v1540, %v1582
    %1584 = vdwg.mxu0
    %1585 = vmatprep.subr.bf16.mxu0 %v1308
    %1586 = vmatpush1.bf16.msra.mxu0 %v1307
    %1587 = vmatprep.subr.bf16.mxu0 %v1310
    %1588 = vmatpush1.bf16.msra.mxu0 %v1309
    %1589 = vmatprep.subr.bf16.mxu0 %v1312
    %1590 = vmatpush1.bf16.msra.mxu0 %v1311
    %1591 = vmatprep.subr.bf16.mxu0 %v1314
    %1592 = vmatpush1.bf16.msra.mxu0 %v1313
    %1593 = vmatprep.subr.bf16.mxu0 %v1316
    %1594 = vmatpush1.bf16.msra.mxu0 %v1315
    %1595 = vmatprep.subr.bf16.mxu0 %v1318
    %1596 = vmatpush1.bf16.msra.mxu0 %v1317
    %1597 = vmatprep.subr.bf16.mxu0 %v1320
    %1598 = vmatpush1.bf16.msra.mxu0 %v1319
    %1599 = vmatprep.subr.bf16.mxu0 %v1322
    %1600 = vmatpush1.bf16.msra.mxu0 %v1321
    %1601 = vmatprep.subr.bf16.mxu0 %v1324
    %1602 = vmatpush1.bf16.msra.mxu0 %v1323
    %1603 = vmatprep.subr.bf16.mxu0 %v1326
    %1604 = vmatpush1.bf16.msra.mxu0 %v1325
    %1605 = vmatprep.subr.bf16.mxu0 %v1328
    %1606 = vmatpush1.bf16.msra.mxu0 %v1327
    %1607 = vmatprep.subr.bf16.mxu0 %v1330
    %1608 = vmatpush1.bf16.msra.mxu0 %v1329
    %1609 = vmatprep.subr.bf16.mxu0 %v1332
    %1610 = vmatpush1.bf16.msra.mxu0 %v1331
    %1611 = vmatprep.subr.bf16.mxu0 %v1334
    %1612 = vmatpush1.bf16.msra.mxu0 %v1333
    %1613 = vmatprep.subr.bf16.mxu0 %v1336
    %1614 = vmatpush1.bf16.msra.mxu0 %v1335
    %1615 = vmatprep.subr.bf16.mxu0 %v1338
    %1616 = vmatpush1.bf16.msra.mxu0 %v1337
    %1617 = vmatprep.mubr.bf16.mxu0 %v716
    %1618 = vmatmul.mubr.bf16.gmra.mrb[0].mxu0 %v715
    %v1619 = vpop.f32.mrb[0].mxu0
    %v1620 = vadd.f32 %v1577, %v1619
    %v1621 = vpop.f32.mrb[0].mxu0
    %v1622 = vadd.f32 %v1579, %v1621
    %v1623 = vpop.f32.mrb[0].mxu0
    %v1624 = vadd.f32 %v1581, %v1623
    %v1625 = vpop.f32.mrb[0].mxu0
    %v1626 = vadd.f32 %v1583, %v1625
    %1627 = vdwg.mxu0
    %1628 = vmatprep.subr.bf16.mxu0 %v1340
    %1629 = vmatpush1.bf16.msra.mxu0 %v1339
    %1630 = vmatprep.subr.bf16.mxu0 %v1342
    %1631 = vmatpush1.bf16.msra.mxu0 %v1341
    %1632 = vmatprep.subr.bf16.mxu0 %v1344
    %1633 = vmatpush1.bf16.msra.mxu0 %v1343
    %1634 = vmatprep.subr.bf16.mxu0 %v1346
    %1635 = vmatpush1.bf16.msra.mxu0 %v1345
    %1636 = vmatprep.subr.bf16.mxu0 %v1348
    %1637 = vmatpush1.bf16.msra.mxu0 %v1347
    %1638 = vmatprep.subr.bf16.mxu0 %v1350
    %1639 = vmatpush1.bf16.msra.mxu0 %v1349
    %1640 = vmatprep.subr.bf16.mxu0 %v1352
    %1641 = vmatpush1.bf16.msra.mxu0 %v1351
    %1642 = vmatprep.subr.bf16.mxu0 %v1354
    %1643 = vmatpush1.bf16.msra.mxu0 %v1353
    %1644 = vmatprep.subr.bf16.mxu0 %v1356
    %1645 = vmatpush1.bf16.msra.mxu0 %v1355
    %1646 = vmatprep.subr.bf16.mxu0 %v1358
    %1647 = vmatpush1.bf16.msra.mxu0 %v1357
    %1648 = vmatprep.subr.bf16.mxu0 %v1360
    %1649 = vmatpush1.bf16.msra.mxu0 %v1359
    %1650 = vmatprep.subr.bf16.mxu0 %v1362
    %1651 = vmatpush1.bf16.msra.mxu0 %v1361
    %1652 = vmatprep.subr.bf16.mxu0 %v1364
    %1653 = vmatpush1.bf16.msra.mxu0 %v1363
    %1654 = vmatprep.subr.bf16.mxu0 %v1366
    %1655 = vmatpush1.bf16.msra.mxu0 %v1365
    %1656 = vmatprep.subr.bf16.mxu0 %v1368
    %1657 = vmatpush1.bf16.msra.mxu0 %v1367
    %1658 = vmatprep.subr.bf16.mxu0 %v1370
    %1659 = vmatpush1.bf16.msra.mxu0 %v1369
    %1660 = vmatprep.mubr.bf16.mxu0 %v718
    %1661 = vmatmul.mubr.bf16.gmra.mrb[0].mxu0 %v717
    %v1662 = vpop.f32.mrb[0].mxu0
    %v1663 = vadd.f32 %v1620, %v1662
    %v1664 = vpop.f32.mrb[0].mxu0
    %v1665 = vadd.f32 %v1622, %v1664
    %v1666 = vpop.f32.mrb[0].mxu0
    %v1667 = vadd.f32 %v1624, %v1666
    %v1668 = vpop.f32.mrb[0].mxu0
    %v1669 = vadd.f32 %v1626, %v1668
    %1670 = vdwg.mxu0
    %v1671 = vmax.f32 %v1663, 0.0
    %v1672 = vmax.f32 %v1665, 0.0
    %v1673 = vmax.f32 %v1667, 0.0
    %v1674 = vmax.f32 %v1669, 0.0
    %v1675 = vpack.c.bf16 %v1673, %v1671
    %v1676 = vpack.c.bf16 %v1674, %v1672
    %v1677 = vld [vmem:[#allocation10] sm:$0xf]
    %v1678 = vld [vmem:[#allocation10 + $0x4] sm:$0xf]
    %v1679 = vld [vmem:[#allocation10 + $0x8] sm:$0xf]
    %v1680 = vld [vmem:[#allocation10 + $0xc] sm:$0xf]
    %v1681 = vld [vmem:[#allocation10 + $0x10] sm:$0xf]
    %v1682 = vld [vmem:[#allocation10 + $0x14] sm:$0xf]
    %v1683 = vld [vmem:[#allocation10 + $0x18] sm:$0xf]
    %v1684 = vld [vmem:[#allocation10 + $0x1c] sm:$0xf]
    %v1685 = vld [vmem:[#allocation10 + $0x20] sm:$0xf]
    %v1686 = vld [vmem:[#allocation10 + $0x24] sm:$0xf]
    %v1687 = vld [vmem:[#allocation10 + $0x28] sm:$0xf]
    %v1688 = vld [vmem:[#allocation10 + $0x2c] sm:$0xf]
    %v1689 = vld [vmem:[#allocation10 + $0x30] sm:$0xf]
    %v1690 = vld [vmem:[#allocation10 + $0x34] sm:$0xf]
    %v1691 = vld [vmem:[#allocation10 + $0x38] sm:$0xf]
    %v1692 = vld [vmem:[#allocation10 + $0x3c] sm:$0xf]
    %v1693 = vld [vmem:[#allocation10 + $0x40] sm:$0xf]
    %v1694 = vld [vmem:[#allocation10 + $0x44] sm:$0xf]
    %v1695 = vld [vmem:[#allocation10 + $0x48] sm:$0xf]
    %v1696 = vld [vmem:[#allocation10 + $0x4c] sm:$0xf]
    %v1697 = vld [vmem:[#allocation10 + $0x50] sm:$0xf]
    %v1698 = vld [vmem:[#allocation10 + $0x54] sm:$0xf]
    %v1699 = vld [vmem:[#allocation10 + $0x58] sm:$0xf]
    %v1700 = vld [vmem:[#allocation10 + $0x5c] sm:$0xf]
    %v1701 = vld [vmem:[#allocation10 + $0x60] sm:$0xf]
    %v1702 = vld [vmem:[#allocation10 + $0x64] sm:$0xf]
    %v1703 = vld [vmem:[#allocation10 + $0x68] sm:$0xf]
    %v1704 = vld [vmem:[#allocation10 + $0x6c] sm:$0xf]
    %v1705 = vld [vmem:[#allocation10 + $0x70] sm:$0xf]
    %v1706 = vld [vmem:[#allocation10 + $0x74] sm:$0xf]
    %v1707 = vld [vmem:[#allocation10 + $0x78] sm:$0xf]
    %v1708 = vld [vmem:[#allocation10 + $0x7c] sm:$0xf]
    %v1709 = vld [vmem:[%s6] sm:$0x1]
    %v1711 = vlaneseq
    %v1712 = vshrl.u32 %v1711, 7
    %v1713 = vsub.s32 0, %v1712
    %v1714 = vrot.slane %v1709, %v1713
    %v1748 = vunpack.c.l.b16 %v1677
    %v1749 = vunpack.c.l.b16 %v1678
    %v1750 = vunpack.c.l.b16 %v1679
    %v1751 = vunpack.c.l.b16 %v1680
    %v1752 = vunpack.c.l.b16 %v1681
    %v1753 = vunpack.c.l.b16 %v1682
    %v1754 = vunpack.c.l.b16 %v1683
    %v1755 = vunpack.c.l.b16 %v1684
    %v1756 = vunpack.c.l.b16 %v1685
    %v1757 = vunpack.c.l.b16 %v1686
    %v1758 = vunpack.c.l.b16 %v1687
    %v1759 = vunpack.c.l.b16 %v1688
    %v1760 = vunpack.c.l.b16 %v1689
    %v1761 = vunpack.c.l.b16 %v1690
    %v1762 = vunpack.c.l.b16 %v1691
    %v1763 = vunpack.c.l.b16 %v1692
    %v1764 = vunpack.c.l.b16 %v1693
    %v1765 = vunpack.c.l.b16 %v1694
    %v1766 = vunpack.c.l.b16 %v1695
    %v1767 = vunpack.c.l.b16 %v1696
    %v1768 = vunpack.c.l.b16 %v1697
    %v1769 = vunpack.c.l.b16 %v1698
    %v1770 = vunpack.c.l.b16 %v1699
    %v1771 = vunpack.c.l.b16 %v1700
    %v1772 = vunpack.c.l.b16 %v1701
    %v1773 = vunpack.c.l.b16 %v1702
    %v1774 = vunpack.c.l.b16 %v1703
    %v1775 = vunpack.c.l.b16 %v1704
    %v1776 = vunpack.c.l.b16 %v1705
    %v1777 = vunpack.c.l.b16 %v1706
    %v1778 = vunpack.c.l.b16 %v1707
    %v1779 = vunpack.c.l.b16 %v1708
    %v1780 = vpack.c.b16 %v1749, %v1748
    %v1781 = vpack.c.b16 %v1751, %v1750
    %v1782 = vpack.c.b16 %v1753, %v1752
    %v1783 = vpack.c.b16 %v1755, %v1754
    %v1784 = vpack.c.b16 %v1757, %v1756
    %v1785 = vpack.c.b16 %v1759, %v1758
    %v1786 = vpack.c.b16 %v1761, %v1760
    %v1787 = vpack.c.b16 %v1763, %v1762
    %v1788 = vpack.c.b16 %v1765, %v1764
    %v1789 = vpack.c.b16 %v1767, %v1766
    %v1790 = vpack.c.b16 %v1769, %v1768
    %v1791 = vpack.c.b16 %v1771, %v1770
    %v1792 = vpack.c.b16 %v1773, %v1772
    %v1793 = vpack.c.b16 %v1775, %v1774
    %v1794 = vpack.c.b16 %v1777, %v1776
    %v1795 = vpack.c.b16 %v1779, %v1778
    %1812 = vmatprep.subr.bf16.mxu0 0
    %1813 = vmatpush1.bf16.msra.mxu0 %v1780
    %1814 = vmatprep.subr.bf16.mxu0 0
    %1815 = vmatpush1.bf16.msra.mxu0 %v1781
    %1816 = vmatprep.subr.bf16.mxu0 0
    %1817 = vmatpush1.bf16.msra.mxu0 %v1782
    %1818 = vmatprep.subr.bf16.mxu0 0
    %1819 = vmatpush1.bf16.msra.mxu0 %v1783
    %1820 = vmatprep.subr.bf16.mxu0 0
    %1821 = vmatpush1.bf16.msra.mxu0 %v1784
    %1822 = vmatprep.subr.bf16.mxu0 0
    %1823 = vmatpush1.bf16.msra.mxu0 %v1785
    %1824 = vmatprep.subr.bf16.mxu0 0
    %1825 = vmatpush1.bf16.msra.mxu0 %v1786
    %1826 = vmatprep.subr.bf16.mxu0 0
    %1827 = vmatpush1.bf16.msra.mxu0 %v1787
    %1828 = vmatprep.subr.bf16.mxu0 0
    %1829 = vmatpush1.bf16.msra.mxu0 %v1788
    %1830 = vmatprep.subr.bf16.mxu0 0
    %1831 = vmatpush1.bf16.msra.mxu0 %v1789
    %1832 = vmatprep.subr.bf16.mxu0 0
    %1833 = vmatpush1.bf16.msra.mxu0 %v1790
    %1834 = vmatprep.subr.bf16.mxu0 0
    %1835 = vmatpush1.bf16.msra.mxu0 %v1791
    %1836 = vmatprep.subr.bf16.mxu0 0
    %1837 = vmatpush1.bf16.msra.mxu0 %v1792
    %1838 = vmatprep.subr.bf16.mxu0 0
    %1839 = vmatpush1.bf16.msra.mxu0 %v1793
    %1840 = vmatprep.subr.bf16.mxu0 0
    %1841 = vmatpush1.bf16.msra.mxu0 %v1794
    %1842 = vmatprep.subr.bf16.mxu0 0
    %1843 = vmatpush1.bf16.msra.mxu0 %v1795
    %1844 = vmatprep.mubr.bf16.mxu0 %v1676
    %1845 = vmatmul.mubr.bf16.gmra.mrb[0].mxu0 %v1675
    %v1846 = vpop.f32.mrb[0].mxu0
    %v1847 = vadd.f32 %v1714, %v1846
    %v1848 = vpop.f32.mrb[0].mxu0
    %v1849 = vpop.f32.mrb[0].mxu0
    %v1850 = vadd.f32 %v1714, %v1849
    %v1851 = vpop.f32.mrb[0].mxu0
    %1852 = vdwg.mxu0
    %v1853 = vpack.c.bf16 %v1850, %v1847
    %v1855 = vunpack.c.l.b16 %v1853
    %v1856 = vunpack.c.h.b16 %v1853
    %v1857 = vpack.c.b16 %v1855, %v1855
    %v1858 = vpack.c.b16 %v1856, %v1856
    %1861 = vst [vmem:[#allocation11] sm:$0xf] %v1857
    %1862 = vst [vmem:[#allocation11 + $0x4] sm:$0xf] %v1858
    // Predicated region
    $region50: #{tpu_custom_call.1} parent=1 // pred_check
      _
    $region51: #{tpu_custom_call.1} parent=1 // pred_check_branch
      %1864 = sbr.rel (0) target = $region53
    $region52: #{tpu_custom_call.1} parent=1 // pred_region
      %s1866 = ssub.s32 128, 64
      %1867 = vsyncadd [#allocation4], %s1866
      %s1868 = sshll.u32 [#allocation11], 4
      %s1869 = int_to_ptr.vmem [resolvable:$true] %s1868
      %1874 = dma.vmem_to_hbm [thread:$0]  %s1869, 64, %s7, [#allocation4], 64, 64, 4
    $region53: #{tpu_custom_call.1} parent=1 // pred_fallthru
      _
    // Predicated region
    $region54: #{tpu_custom_call.1} parent=1 // pred_check
      _
    $region55: #{tpu_custom_call.1} parent=1 // pred_check_branch
      %1876 = sbr.rel (0) target = $region57
    $region56: #{tpu_custom_call.1} parent=1 // pred_region
      %1877 = dma.done [#allocation4], 128
    $region57: #{tpu_custom_call.1} parent=1 // pred_fallthru
      _
    %1878 = vsyncpa [#allocation3], 1
    %1879 = vsyncpa [#allocation6], 1
    %1880 = vsyncpa [#allocation9], 1
    %1881 = vsyncpa [#allocation4], 1

</llo_original>
